<compile_context>
chip_gen: v7x
topology: tpu7x:2x2x1
jax: 0.10.0
libtpu: 0.0.40
codegen_flags: <defaults>
</compile_context>

<pallas_src>
import functools

import jax
import jax.numpy as jnp
from jax.experimental import pallas as pl
from jax.experimental.pallas import tpu as pltpu

_SQRT_HALF = 0.7071067811865476


def _gelu(x):
    # Exact (erf) GELU.  erf has no guaranteed Mosaic lowering, so use the
    # Abramowitz-Stegun 7.1.26 rational approximation (|err| <= 1.5e-7), rewritten
    # as gelu(x) = relu(x) - 0.5*|x| * poly(t) * exp(-z^2) to drop the sign select.
    # The reciprocal uses the EUP approx seed + one Newton step (keeps the divide
    # off the VALU while staying ~f32 accurate); exp/rsqrt land on the EUP slot.
    z = x * _SQRT_HALF
    az = jnp.abs(z)
    den = 1.0 + 0.3275911 * az
    t = pl.reciprocal(den, approx=True)
    t = t * (2.0 - den * t)                      # one Newton refinement
    a1, a2, a3, a4, a5 = (0.254829592, -0.284496736, 1.421413741,
                          -1.453152027, 1.061405429)
    poly = ((((a5 * t + a4) * t + a3) * t + a2) * t + a1) * t
    e = poly * jnp.exp(-az * az)
    return jnp.maximum(x, 0.0) - (az * _SQRT_HALF) * e


def _matmul_cs(w, x):
    """(M, K) @ (K, N) with channels on sublanes and space on the lane axis.

    For the tiny K/M of this module the MXU is mostly idle and pays push/pop
    latency, so unroll as VPU broadcast-FMAs; fall back to a bf16 MXU matmul
    (f32 accumulation) for large channel counts.
    """
    m, k = w.shape
    if k <= 32 and m <= 128:
        acc = w[:, 0:1] * x[0:1, :]
        for i in range(1, k):
            acc = acc + w[:, i:i + 1] * x[i:i + 1, :]
        return acc
    return jnp.dot(w.astype(jnp.bfloat16), x.astype(jnp.bfloat16),
                   preferred_element_type=jnp.float32)


def _shift_lanes(x, off):
    """out[:, q] = x[:, q + off], zero fill at both ends of the (flat) lane axis."""
    if off == 0:
        return x
    n = x.shape[1]
    z = jnp.zeros((x.shape[0], abs(off)), x.dtype)
    if off > 0:
        return jnp.concatenate([x[:, off:], z], axis=1)
    return jnp.concatenate([z, x[:, :n + off]], axis=1)


def _mlp_kernel(xc_ref, xp_ref, xn_ref, ln_w_ref, ln_b_ref, fc1_w_ref,
                fc1_b_ref, pos_w_ref, pos_b_ref, fc2_w_ref, fc2_b_ref, o_ref,
                *, img_w, eps):
    C, TL = xc_ref.shape              # TL = tile_rows * W  (lane axis)
    W = img_w
    TH = TL // W
    EXT = TL + 2 * W                  # tile + one halo row above / below

    s = pl.program_id(1)
    n_s = pl.num_programs(1)

    ln_w = ln_w_ref[...]              # (C, 1)  broadcast along lanes
    ln_b = ln_b_ref[...]
    w1 = fc1_w_ref[...]               # (hid, C)
    b1 = fc1_b_ref[...]               # (hid, 1)

    def ln_fc1_gelu(x):               # x: (C, n) -> (hid, n)
        u = jnp.mean(x, axis=0, keepdims=True)
        d = x - u
        var = jnp.mean(d * d, axis=0, keepdims=True)
        xn = d * jax.lax.rsqrt(var + eps)        # rsqrt -> EUP (was a divide)
        xn = xn * ln_w + ln_b
        return _gelu(_matmul_cs(w1, xn) + b1)

    # Center tile + one recomputed halo row taken from the neighbouring tiles.
    h1_c = ln_fc1_gelu(xc_ref[...])                              # (hid, TL)
    xp_row = xp_ref[...][:, (TH - 1) * W:]                       # last row of prev tile
    xn_row = xn_ref[...][:, :W]                                  # first row of next tile
    h1_p = jnp.where(s > 0, ln_fc1_gelu(xp_row), 0.0)            # zeros at image top
    h1_n = jnp.where(s < n_s - 1, ln_fc1_gelu(xn_row), 0.0)      # zeros at image bottom
    h1e = jnp.concatenate([h1_p, h1_c, h1_n], axis=1)            # (hid, EXT)

    # Depthwise 3x3 on the flattened (row-major) spatial axis: 9 static shifted
    # FMAs.  Only the two x-boundary masks are needed (y zero-padding comes from
    # the zeroed halo rows); masks are hoisted and built from a (1, EXT) iota.
    col = jax.lax.broadcasted_iota(jnp.int32, (1, EXT), 1) % W
    m_l = col >= 1                     # reading x-1 stays inside the row
    m_r = col <= W - 2                 # reading x+1 stays inside the row

    pw = pos_w_ref[...]                # (hid, 9), tap index k = ky*3 + kx

    def tap(off, k):
        return _shift_lanes(h1e, off) * pw[:, k:k + 1]

    acc_c = tap(-W, 1) + tap(0, 4) + tap(W, 7)                   # dx = 0
    acc_l = tap(-W - 1, 0) + tap(-1, 3) + tap(W - 1, 6)          # dx = -1
    acc_r = tap(-W + 1, 2) + tap(1, 5) + tap(W + 1, 8)           # dx = +1
    acc = acc_c + jnp.where(m_l, acc_l, 0.0) + jnp.where(m_r, acc_r, 0.0)

    pos = acc[:, W:W + TL] + pos_b_ref[...]                      # center rows only
    h2 = h1_c + _gelu(pos)

    out = _matmul_cs(fc2_w_ref[...], h2) + fc2_b_ref[...]        # (C, TL)
    o_ref[...] = out.astype(o_ref.dtype)                         # lane-dense store


def _pick_tile_rows(H, W, hid, batch):
    """Rows per spatial tile: lane-aligned (tile_rows*W % 128 == 0, or the whole
    image), live f32 activations well under the scoped-VMEM budget (fits v7x's
    64 MiB at large shapes), preferring >= 2 spatial tiles so a single image can
    still feed both v7x TensorCores."""
    HW = H * W
    cands = [th for th in range(1, H + 1)
             if H % th == 0 and ((th * W) % 128 == 0 or th * W == HW)]
    budget = 8 << 20                                  # ~12 live (hid, (th+2)*W) f32
    fit = [th for th in cands if 12 * hid * (th + 2) * W * 4 <= budget] or cands[:1]
    split = [th for th in fit if th < H]
    if split and batch * (H // max(split)) >= 2:
        return max(split)
    return max(fit)


def mlp_pallas(x_nchw, params, *, tile_rows=None):
    """Forward of MLP(dim) on an NCHW input using a Pallas TPU kernel."""
    B, C, H, W = x_nchw.shape
    hid = params["fc1_w"].shape[0]
    HW = H * W

    TH = _pick_tile_rows(H, W, hid, B) if tile_rows is None else tile_rows
    assert H % TH == 0 and ((TH * W) % 128 == 0 or TH * W == HW), (TH, W)
    S = H // TH
    TL = TH * W

    f32 = jnp.float32
    x = x_nchw.reshape(B, C, HW).astype(f32)            # free reshape, no transpose
    ln_w = params["ln_w"].reshape(C, 1).astype(f32)
    ln_b = params["ln_b"].reshape(C, 1).astype(f32)
    fc1_w = params["fc1_w"].reshape(hid, C).astype(f32)
    fc1_b = params["fc1_b"].reshape(hid, 1).astype(f32)
    pos_w = params["pos_w"].reshape(hid, 9).astype(f32)  # k = ky*3 + kx
    pos_b = params["pos_b"].reshape(hid, 1).astype(f32)
    fc2_w = params["fc2_w"].reshape(C, hid).astype(f32)
    fc2_b = params["fc2_b"].reshape(C, 1).astype(f32)

    kernel = functools.partial(_mlp_kernel, img_w=W, eps=1e-6)
    xblk = (None, C, TL)
    param_spec = lambda shape: pl.BlockSpec(shape, lambda b, s: (0, 0))

    out = pl.pallas_call(
        kernel,
        out_shape=jax.ShapeDtypeStruct((B, C, HW), f32),
        grid=(B, S),
        in_specs=[
            pl.BlockSpec(xblk, lambda b, s: (b, 0, s)),                          # center tile
            pl.BlockSpec(xblk, lambda b, s: (b, 0, jnp.maximum(s - 1, 0))),      # prev tile (halo row)
            pl.BlockSpec(xblk, lambda b, s: (b, 0, jnp.minimum(s + 1, S - 1))),  # next tile (halo row)
            param_spec((C, 1)), param_spec((C, 1)),
            param_spec((hid, C)), param_spec((hid, 1)),
            param_spec((hid, 9)), param_spec((hid, 1)),
            param_spec((C, hid)), param_spec((C, 1)),
        ],
        out_specs=pl.BlockSpec(xblk, lambda b, s: (b, 0, s)),
        compiler_params=pltpu.CompilerParams(
            dimension_semantics=("parallel", "parallel"),
            vmem_limit_bytes=48 * 1024 * 1024,  # > default 16/32 MiB, < v7x 64 MiB
        ),
    )(x, x, x, ln_w, ln_b, fc1_w, fc1_b, pos_w, pos_b, fc2_w, fc2_b)
    return out.reshape(B, C, H, W)


# ------------------------- pure-JAX reference -------------------------------
def _gelu_exact(x):
    return 0.5 * x * (1.0 + jax.scipy.special.erf(x * _SQRT_HALF))


def mlp_ref(x, p):
    eps = 1e-6
    u = jnp.mean(x, axis=1, keepdims=True)
    s = jnp.mean((x - u) ** 2, axis=1, keepdims=True)
    xn = (x - u) / jnp.sqrt(s + eps)
    xn = p["ln_w"][None, :, None, None] * xn + p["ln_b"][None, :, None, None]
    h = jnp.einsum("bchw,dc->bdhw", xn, p["fc1_w"][:, :, 0, 0])
    h = _gelu_exact(h + p["fc1_b"][None, :, None, None])
    hid = h.shape[1]
    pos = jax.lax.conv_general_dilated(
        h, p["pos_w"], window_strides=(1, 1), padding=((1, 1), (1, 1)),
        dimension_numbers=("NCHW", "OIHW", "NCHW"), feature_group_count=hid)
    pos = pos + p["pos_b"][None, :, None, None]
    h = h + _gelu_exact(pos)
    out = jnp.einsum("bdhw,cd->bchw", h, p["fc2_w"][:, :, 0, 0])
    return out + p["fc2_b"][None, :, None, None]


if __name__ == "__main__":
    B, C, H, W = 2, 4, 16, 16
    mlp_ratio = 4
    hid = C * mlp_ratio

    key = jax.random.PRNGKey(0)
    ks = jax.random.split(key, 9)
    params = {
        "ln_w":  1.0 + 0.1 * jax.random.normal(ks[0], (C,), jnp.float32),
        "ln_b":  0.1 * jax.random.normal(ks[1], (C,), jnp.float32),
        "fc1_w": 0.2 * jax.random.normal(ks[2], (hid, C, 1, 1), jnp.float32),
        "fc1_b": 0.1 * jax.random.normal(ks[3], (hid,), jnp.float32),
        "pos_w": 0.2 * jax.random.normal(ks[4], (hid, 1, 3, 3), jnp.float32),
        "pos_b": 0.1 * jax.random.normal(ks[5], (hid,), jnp.float32),
        "fc2_w": 0.2 * jax.random.normal(ks[6], (C, hid, 1, 1), jnp.float32),
        "fc2_b": 0.1 * jax.random.normal(ks[7], (C,), jnp.float32),
    }
    x = jax.random.normal(ks[8], (B, C, H, W), jnp.float32)

    # auto tiling picks 8 rows/tile here -> grid (2, 2), exercising the halo path
    out = jax.block_until_ready(mlp_pallas(x, params))
    ref = jax.block_until_ready(mlp_ref(x, params))

    assert out.shape == (B, C, H, W), out.shape
    max_err = float(jnp.max(jnp.abs(out - ref)))
    if not bool(jnp.allclose(out, ref, atol=1e-4, rtol=1e-4)):
        raise AssertionError(f"mismatch vs reference, max abs err = {max_err}")
    print("KERNEL_OK")
</pallas_src>

<mosaic_0001>
module attributes {stable_mosaic.version = 11 : i64} {
  func.func @_mlp_kernel(%arg0: i32, %arg1: i32, %arg2: memref<1x4x128xf32, #tpu.memory_space<vmem>>, %arg3: memref<1x4x128xf32, #tpu.memory_space<vmem>>, %arg4: memref<1x4x128xf32, #tpu.memory_space<vmem>>, %arg5: memref<4x1xf32, #tpu.memory_space<vmem>>, %arg6: memref<4x1xf32, #tpu.memory_space<vmem>>, %arg7: memref<16x4xf32, #tpu.memory_space<vmem>>, %arg8: memref<16x1xf32, #tpu.memory_space<vmem>>, %arg9: memref<16x9xf32, #tpu.memory_space<vmem>>, %arg10: memref<16x1xf32, #tpu.memory_space<vmem>>, %arg11: memref<4x16xf32, #tpu.memory_space<vmem>>, %arg12: memref<4x1xf32, #tpu.memory_space<vmem>>, %arg13: memref<1x4x128xf32, #tpu.memory_space<vmem>>) attributes {dimension_semantics = [#tpu.dimension_semantics<parallel>, #tpu.dimension_semantics<parallel>], iteration_bounds = array<i64: 2, 2>, scalar_prefetch = 0 : i64, scratch_operands = 0 : i64, tpu.core_type = #tpu.core_type<tc>, window_params = [{transform_indices = @transform_0, window_bounds = array<i64: 1, 4, 128>}, {transform_indices = @transform_1, window_bounds = array<i64: 1, 4, 128>}, {transform_indices = @transform_2, window_bounds = array<i64: 1, 4, 128>}, {pipeline_mode = #tpu.pipeline_mode<synchronous>, transform_indices = @transform_3, window_bounds = array<i64: 4, 1>}, {pipeline_mode = #tpu.pipeline_mode<synchronous>, transform_indices = @transform_4, window_bounds = array<i64: 4, 1>}, {pipeline_mode = #tpu.pipeline_mode<synchronous>, transform_indices = @transform_5, window_bounds = array<i64: 16, 4>}, {pipeline_mode = #tpu.pipeline_mode<synchronous>, transform_indices = @transform_6, window_bounds = array<i64: 16, 1>}, {pipeline_mode = #tpu.pipeline_mode<synchronous>, transform_indices = @transform_7, window_bounds = array<i64: 16, 9>}, {pipeline_mode = #tpu.pipeline_mode<synchronous>, transform_indices = @transform_8, window_bounds = array<i64: 16, 1>}, {pipeline_mode = #tpu.pipeline_mode<synchronous>, transform_indices = @transform_9, window_bounds = array<i64: 4, 16>}, {pipeline_mode = #tpu.pipeline_mode<synchronous>, transform_indices = @transform_10, window_bounds = array<i64: 4, 1>}, {transform_indices = @transform_11, window_bounds = array<i64: 1, 4, 128>}]} {
    %c0 = arith.constant 0 : index
    %c0_0 = arith.constant 0 : index
    %0 = vector.load %arg5[%c0, %c0_0] : memref<4x1xf32, #tpu.memory_space<vmem>>, vector<4x1xf32>
    %c0_1 = arith.constant 0 : index
    %c0_2 = arith.constant 0 : index
    %1 = vector.load %arg6[%c0_1, %c0_2] : memref<4x1xf32, #tpu.memory_space<vmem>>, vector<4x1xf32>
    %c0_3 = arith.constant 0 : index
    %c0_4 = arith.constant 0 : index
    %2 = vector.load %arg7[%c0_3, %c0_4] : memref<16x4xf32, #tpu.memory_space<vmem>>, vector<16x4xf32>
    %c0_5 = arith.constant 0 : index
    %c0_6 = arith.constant 0 : index
    %3 = vector.load %arg8[%c0_5, %c0_6] : memref<16x1xf32, #tpu.memory_space<vmem>>, vector<16x1xf32>
    %c0_7 = arith.constant 0 : index
    %c0_8 = arith.constant 0 : index
    %c0_9 = arith.constant 0 : index
    %4 = vector.load %arg2[%c0_7, %c0_8, %c0_9] : memref<1x4x128xf32, #tpu.memory_space<vmem>>, vector<1x4x128xf32>
    %5 = vector.shape_cast %4 : vector<1x4x128xf32> to vector<4x128xf32>
    %cst = arith.constant dense<0.000000e+00> : vector<128xf32>
    %6 = vector.multi_reduction <add>, %5, %cst [0] : vector<4x128xf32> to vector<128xf32>
    %7 = vector.shape_cast %6 : vector<128xf32> to vector<1x128xf32>
    %cst_10 = arith.constant 4.000000e+00 : f32
    %8 = vector.broadcast %cst_10 : f32 to vector<1x128xf32>
    %9 = arith.divf %7, %8 : vector<1x128xf32>
    %10 = vector.broadcast %9 : vector<1x128xf32> to vector<4x128xf32>
    %11 = arith.subf %5, %10 : vector<4x128xf32>
    %12 = arith.mulf %11, %11 : vector<4x128xf32>
    %cst_11 = arith.constant dense<0.000000e+00> : vector<128xf32>
    %13 = vector.multi_reduction <add>, %12, %cst_11 [0] : vector<4x128xf32> to vector<128xf32>
    %14 = vector.shape_cast %13 : vector<128xf32> to vector<1x128xf32>
    %cst_12 = arith.constant 4.000000e+00 : f32
    %15 = vector.broadcast %cst_12 : f32 to vector<1x128xf32>
    %16 = arith.divf %14, %15 : vector<1x128xf32>
    %cst_13 = arith.constant 9.99999997E-7 : f32
    %17 = vector.broadcast %cst_13 : f32 to vector<1x128xf32>
    %18 = arith.addf %16, %17 : vector<1x128xf32>
    %19 = math.rsqrt %18 : vector<1x128xf32>
    %20 = vector.broadcast %19 : vector<1x128xf32> to vector<4x128xf32>
    %21 = arith.mulf %11, %20 : vector<4x128xf32>
    %22 = vector.broadcast %0 : vector<4x1xf32> to vector<4x128xf32>
    %23 = arith.mulf %21, %22 : vector<4x128xf32>
    %24 = vector.broadcast %1 : vector<4x1xf32> to vector<4x128xf32>
    %25 = arith.addf %23, %24 : vector<4x128xf32>
    %26 = vector.extract_strided_slice %2 {offsets = [0, 0], sizes = [16, 1], strides = [1, 1]} : vector<16x4xf32> to vector<16x1xf32>
    %27 = vector.extract_strided_slice %25 {offsets = [0, 0], sizes = [1, 128], strides = [1, 1]} : vector<4x128xf32> to vector<1x128xf32>
    %28 = vector.broadcast %26 : vector<16x1xf32> to vector<16x128xf32>
    %29 = vector.broadcast %27 : vector<1x128xf32> to vector<16x128xf32>
    %30 = arith.mulf %28, %29 : vector<16x128xf32>
    %31 = vector.extract_strided_slice %2 {offsets = [0, 1], sizes = [16, 1], strides = [1, 1]} : vector<16x4xf32> to vector<16x1xf32>
    %32 = vector.extract_strided_slice %25 {offsets = [1, 0], sizes = [1, 128], strides = [1, 1]} : vector<4x128xf32> to vector<1x128xf32>
    %33 = vector.broadcast %31 : vector<16x1xf32> to vector<16x128xf32>
    %34 = vector.broadcast %32 : vector<1x128xf32> to vector<16x128xf32>
    %35 = arith.mulf %33, %34 : vector<16x128xf32>
    %36 = arith.addf %30, %35 : vector<16x128xf32>
    %37 = vector.extract_strided_slice %2 {offsets = [0, 2], sizes = [16, 1], strides = [1, 1]} : vector<16x4xf32> to vector<16x1xf32>
    %38 = vector.extract_strided_slice %25 {offsets = [2, 0], sizes = [1, 128], strides = [1, 1]} : vector<4x128xf32> to vector<1x128xf32>
    %39 = vector.broadcast %37 : vector<16x1xf32> to vector<16x128xf32>
    %40 = vector.broadcast %38 : vector<1x128xf32> to vector<16x128xf32>
    %41 = arith.mulf %39, %40 : vector<16x128xf32>
    %42 = arith.addf %36, %41 : vector<16x128xf32>
    %43 = vector.extract_strided_slice %2 {offsets = [0, 3], sizes = [16, 1], strides = [1, 1]} : vector<16x4xf32> to vector<16x1xf32>
    %44 = vector.extract_strided_slice %25 {offsets = [3, 0], sizes = [1, 128], strides = [1, 1]} : vector<4x128xf32> to vector<1x128xf32>
    %45 = vector.broadcast %43 : vector<16x1xf32> to vector<16x128xf32>
    %46 = vector.broadcast %44 : vector<1x128xf32> to vector<16x128xf32>
    %47 = arith.mulf %45, %46 : vector<16x128xf32>
    %48 = arith.addf %42, %47 : vector<16x128xf32>
    %49 = vector.broadcast %3 : vector<16x1xf32> to vector<16x128xf32>
    %50 = arith.addf %48, %49 : vector<16x128xf32>
    %cst_14 = arith.constant 0.707106769 : f32
    %51 = vector.broadcast %cst_14 : f32 to vector<16x128xf32>
    %52 = arith.mulf %50, %51 : vector<16x128xf32>
    %53 = math.absf %52 : vector<16x128xf32>
    %cst_15 = arith.constant 0.327591091 : f32
    %54 = vector.broadcast %cst_15 : f32 to vector<16x128xf32>
    %55 = arith.mulf %54, %53 : vector<16x128xf32>
    %cst_16 = arith.constant 1.000000e+00 : f32
    %56 = vector.broadcast %cst_16 : f32 to vector<16x128xf32>
    %57 = arith.addf %56, %55 : vector<16x128xf32>
    %58 = tpu.reciprocal %57 {approx = true} : vector<16x128xf32> -> vector<16x128xf32>
    %59 = arith.mulf %57, %58 : vector<16x128xf32>
    %cst_17 = arith.constant 2.000000e+00 : f32
    %60 = vector.broadcast %cst_17 : f32 to vector<16x128xf32>
    %61 = arith.subf %60, %59 : vector<16x128xf32>
    %62 = arith.mulf %58, %61 : vector<16x128xf32>
    %cst_18 = arith.constant 1.06140542 : f32
    %63 = vector.broadcast %cst_18 : f32 to vector<16x128xf32>
    %64 = arith.mulf %63, %62 : vector<16x128xf32>
    %cst_19 = arith.constant -1.45315206 : f32
    %65 = vector.broadcast %cst_19 : f32 to vector<16x128xf32>
    %66 = arith.addf %64, %65 : vector<16x128xf32>
    %67 = arith.mulf %66, %62 : vector<16x128xf32>
    %cst_20 = arith.constant 1.42141378 : f32
    %68 = vector.broadcast %cst_20 : f32 to vector<16x128xf32>
    %69 = arith.addf %67, %68 : vector<16x128xf32>
    %70 = arith.mulf %69, %62 : vector<16x128xf32>
    %cst_21 = arith.constant -0.284496725 : f32
    %71 = vector.broadcast %cst_21 : f32 to vector<16x128xf32>
    %72 = arith.addf %70, %71 : vector<16x128xf32>
    %73 = arith.mulf %72, %62 : vector<16x128xf32>
    %cst_22 = arith.constant 0.254829586 : f32
    %74 = vector.broadcast %cst_22 : f32 to vector<16x128xf32>
    %75 = arith.addf %73, %74 : vector<16x128xf32>
    %76 = arith.mulf %75, %62 : vector<16x128xf32>
    %cst_23 = arith.constant 0.000000e+00 : f32
    %77 = vector.broadcast %cst_23 : f32 to vector<16x128xf32>
    %78 = arith.subf %77, %53 : vector<16x128xf32>
    %79 = arith.mulf %78, %53 : vector<16x128xf32>
    %80 = math.exp %79 : vector<16x128xf32>
    %81 = arith.mulf %76, %80 : vector<16x128xf32>
    %cst_24 = arith.constant 0.000000e+00 : f32
    %82 = vector.broadcast %cst_24 : f32 to vector<16x128xf32>
    %83 = arith.maximumf %50, %82 : vector<16x128xf32>
    %cst_25 = arith.constant 0.707106769 : f32
    %84 = vector.broadcast %cst_25 : f32 to vector<16x128xf32>
    %85 = arith.mulf %53, %84 : vector<16x128xf32>
    %86 = arith.mulf %85, %81 : vector<16x128xf32>
    %87 = arith.subf %83, %86 : vector<16x128xf32>
    %c0_26 = arith.constant 0 : index
    %c0_27 = arith.constant 0 : index
    %c0_28 = arith.constant 0 : index
    %88 = vector.load %arg3[%c0_26, %c0_27, %c0_28] : memref<1x4x128xf32, #tpu.memory_space<vmem>>, vector<1x4x128xf32>
    %89 = vector.shape_cast %88 : vector<1x4x128xf32> to vector<4x128xf32>
    %90 = vector.extract_strided_slice %89 {offsets = [0, 112], sizes = [4, 16], strides = [1, 1]} : vector<4x128xf32> to vector<4x16xf32>
    %c0_29 = arith.constant 0 : index
    %c0_30 = arith.constant 0 : index
    %c0_31 = arith.constant 0 : index
    %91 = vector.load %arg4[%c0_29, %c0_30, %c0_31] : memref<1x4x128xf32, #tpu.memory_space<vmem>>, vector<1x4x128xf32>
    %92 = vector.shape_cast %91 : vector<1x4x128xf32> to vector<4x128xf32>
    %93 = vector.extract_strided_slice %92 {offsets = [0, 0], sizes = [4, 16], strides = [1, 1]} : vector<4x128xf32> to vector<4x16xf32>
    %c0_i32 = arith.constant 0 : i32
    %94 = arith.cmpi sgt, %arg1, %c0_i32 : i32
    %cst_32 = arith.constant dense<0.000000e+00> : vector<16xf32>
    %95 = vector.multi_reduction <add>, %90, %cst_32 [0] : vector<4x16xf32> to vector<16xf32>
    %96 = vector.shape_cast %95 : vector<16xf32> to vector<1x16xf32>
    %cst_33 = arith.constant 4.000000e+00 : f32
    %97 = vector.broadcast %cst_33 : f32 to vector<1x16xf32>
    %98 = arith.divf %96, %97 : vector<1x16xf32>
    %99 = vector.broadcast %98 : vector<1x16xf32> to vector<4x16xf32>
    %100 = arith.subf %90, %99 : vector<4x16xf32>
    %101 = arith.mulf %100, %100 : vector<4x16xf32>
    %cst_34 = arith.constant dense<0.000000e+00> : vector<16xf32>
    %102 = vector.multi_reduction <add>, %101, %cst_34 [0] : vector<4x16xf32> to vector<16xf32>
    %103 = vector.shape_cast %102 : vector<16xf32> to vector<1x16xf32>
    %cst_35 = arith.constant 4.000000e+00 : f32
    %104 = vector.broadcast %cst_35 : f32 to vector<1x16xf32>
    %105 = arith.divf %103, %104 : vector<1x16xf32>
    %cst_36 = arith.constant 9.99999997E-7 : f32
    %106 = vector.broadcast %cst_36 : f32 to vector<1x16xf32>
    %107 = arith.addf %105, %106 : vector<1x16xf32>
    %108 = math.rsqrt %107 : vector<1x16xf32>
    %109 = vector.broadcast %108 : vector<1x16xf32> to vector<4x16xf32>
    %110 = arith.mulf %100, %109 : vector<4x16xf32>
    %111 = vector.broadcast %0 : vector<4x1xf32> to vector<4x16xf32>
    %112 = arith.mulf %110, %111 : vector<4x16xf32>
    %113 = vector.broadcast %1 : vector<4x1xf32> to vector<4x16xf32>
    %114 = arith.addf %112, %113 : vector<4x16xf32>
    %115 = vector.extract_strided_slice %2 {offsets = [0, 0], sizes = [16, 1], strides = [1, 1]} : vector<16x4xf32> to vector<16x1xf32>
    %116 = vector.extract_strided_slice %114 {offsets = [0, 0], sizes = [1, 16], strides = [1, 1]} : vector<4x16xf32> to vector<1x16xf32>
    %117 = vector.broadcast %115 : vector<16x1xf32> to vector<16x16xf32>
    %118 = vector.broadcast %116 : vector<1x16xf32> to vector<16x16xf32>
    %119 = arith.mulf %117, %118 : vector<16x16xf32>
    %120 = vector.extract_strided_slice %2 {offsets = [0, 1], sizes = [16, 1], strides = [1, 1]} : vector<16x4xf32> to vector<16x1xf32>
    %121 = vector.extract_strided_slice %114 {offsets = [1, 0], sizes = [1, 16], strides = [1, 1]} : vector<4x16xf32> to vector<1x16xf32>
    %122 = vector.broadcast %120 : vector<16x1xf32> to vector<16x16xf32>
    %123 = vector.broadcast %121 : vector<1x16xf32> to vector<16x16xf32>
    %124 = arith.mulf %122, %123 : vector<16x16xf32>
    %125 = arith.addf %119, %124 : vector<16x16xf32>
    %126 = vector.extract_strided_slice %2 {offsets = [0, 2], sizes = [16, 1], strides = [1, 1]} : vector<16x4xf32> to vector<16x1xf32>
    %127 = vector.extract_strided_slice %114 {offsets = [2, 0], sizes = [1, 16], strides = [1, 1]} : vector<4x16xf32> to vector<1x16xf32>
    %128 = vector.broadcast %126 : vector<16x1xf32> to vector<16x16xf32>
    %129 = vector.broadcast %127 : vector<1x16xf32> to vector<16x16xf32>
    %130 = arith.mulf %128, %129 : vector<16x16xf32>
    %131 = arith.addf %125, %130 : vector<16x16xf32>
    %132 = vector.extract_strided_slice %2 {offsets = [0, 3], sizes = [16, 1], strides = [1, 1]} : vector<16x4xf32> to vector<16x1xf32>
    %133 = vector.extract_strided_slice %114 {offsets = [3, 0], sizes = [1, 16], strides = [1, 1]} : vector<4x16xf32> to vector<1x16xf32>
    %134 = vector.broadcast %132 : vector<16x1xf32> to vector<16x16xf32>
    %135 = vector.broadcast %133 : vector<1x16xf32> to vector<16x16xf32>
    %136 = arith.mulf %134, %135 : vector<16x16xf32>
    %137 = arith.addf %131, %136 : vector<16x16xf32>
    %138 = vector.broadcast %3 : vector<16x1xf32> to vector<16x16xf32>
    %139 = arith.addf %137, %138 : vector<16x16xf32>
    %cst_37 = arith.constant 0.707106769 : f32
    %140 = vector.broadcast %cst_37 : f32 to vector<16x16xf32>
    %141 = arith.mulf %139, %140 : vector<16x16xf32>
    %142 = math.absf %141 : vector<16x16xf32>
    %cst_38 = arith.constant 0.327591091 : f32
    %143 = vector.broadcast %cst_38 : f32 to vector<16x16xf32>
    %144 = arith.mulf %143, %142 : vector<16x16xf32>
    %cst_39 = arith.constant 1.000000e+00 : f32
    %145 = vector.broadcast %cst_39 : f32 to vector<16x16xf32>
    %146 = arith.addf %145, %144 : vector<16x16xf32>
    %147 = tpu.reciprocal %146 {approx = true} : vector<16x16xf32> -> vector<16x16xf32>
    %148 = arith.mulf %146, %147 : vector<16x16xf32>
    %cst_40 = arith.constant 2.000000e+00 : f32
    %149 = vector.broadcast %cst_40 : f32 to vector<16x16xf32>
    %150 = arith.subf %149, %148 : vector<16x16xf32>
    %151 = arith.mulf %147, %150 : vector<16x16xf32>
    %cst_41 = arith.constant 1.06140542 : f32
    %152 = vector.broadcast %cst_41 : f32 to vector<16x16xf32>
    %153 = arith.mulf %152, %151 : vector<16x16xf32>
    %cst_42 = arith.constant -1.45315206 : f32
    %154 = vector.broadcast %cst_42 : f32 to vector<16x16xf32>
    %155 = arith.addf %153, %154 : vector<16x16xf32>
    %156 = arith.mulf %155, %151 : vector<16x16xf32>
    %cst_43 = arith.constant 1.42141378 : f32
    %157 = vector.broadcast %cst_43 : f32 to vector<16x16xf32>
    %158 = arith.addf %156, %157 : vector<16x16xf32>
    %159 = arith.mulf %158, %151 : vector<16x16xf32>
    %cst_44 = arith.constant -0.284496725 : f32
    %160 = vector.broadcast %cst_44 : f32 to vector<16x16xf32>
    %161 = arith.addf %159, %160 : vector<16x16xf32>
    %162 = arith.mulf %161, %151 : vector<16x16xf32>
    %cst_45 = arith.constant 0.254829586 : f32
    %163 = vector.broadcast %cst_45 : f32 to vector<16x16xf32>
    %164 = arith.addf %162, %163 : vector<16x16xf32>
    %165 = arith.mulf %164, %151 : vector<16x16xf32>
    %cst_46 = arith.constant 0.000000e+00 : f32
    %166 = vector.broadcast %cst_46 : f32 to vector<16x16xf32>
    %167 = arith.subf %166, %142 : vector<16x16xf32>
    %168 = arith.mulf %167, %142 : vector<16x16xf32>
    %169 = math.exp %168 : vector<16x16xf32>
    %170 = arith.mulf %165, %169 : vector<16x16xf32>
    %cst_47 = arith.constant 0.000000e+00 : f32
    %171 = vector.broadcast %cst_47 : f32 to vector<16x16xf32>
    %172 = arith.maximumf %139, %171 : vector<16x16xf32>
    %cst_48 = arith.constant 0.707106769 : f32
    %173 = vector.broadcast %cst_48 : f32 to vector<16x16xf32>
    %174 = arith.mulf %142, %173 : vector<16x16xf32>
    %175 = arith.mulf %174, %170 : vector<16x16xf32>
    %176 = arith.subf %172, %175 : vector<16x16xf32>
    %cst_49 = arith.constant 0.000000e+00 : f32
    %177 = vector.broadcast %cst_49 : f32 to vector<16x16xf32>
    %178 = arith.select %94, %176, %177 : vector<16x16xf32>
    %c1_i32 = arith.constant 1 : i32
    %179 = arith.cmpi slt, %arg1, %c1_i32 : i32
    %cst_50 = arith.constant dense<0.000000e+00> : vector<16xf32>
    %180 = vector.multi_reduction <add>, %93, %cst_50 [0] : vector<4x16xf32> to vector<16xf32>
    %181 = vector.shape_cast %180 : vector<16xf32> to vector<1x16xf32>
    %cst_51 = arith.constant 4.000000e+00 : f32
    %182 = vector.broadcast %cst_51 : f32 to vector<1x16xf32>
    %183 = arith.divf %181, %182 : vector<1x16xf32>
    %184 = vector.broadcast %183 : vector<1x16xf32> to vector<4x16xf32>
    %185 = arith.subf %93, %184 : vector<4x16xf32>
    %186 = arith.mulf %185, %185 : vector<4x16xf32>
    %cst_52 = arith.constant dense<0.000000e+00> : vector<16xf32>
    %187 = vector.multi_reduction <add>, %186, %cst_52 [0] : vector<4x16xf32> to vector<16xf32>
    %188 = vector.shape_cast %187 : vector<16xf32> to vector<1x16xf32>
    %cst_53 = arith.constant 4.000000e+00 : f32
    %189 = vector.broadcast %cst_53 : f32 to vector<1x16xf32>
    %190 = arith.divf %188, %189 : vector<1x16xf32>
    %cst_54 = arith.constant 9.99999997E-7 : f32
    %191 = vector.broadcast %cst_54 : f32 to vector<1x16xf32>
    %192 = arith.addf %190, %191 : vector<1x16xf32>
    %193 = math.rsqrt %192 : vector<1x16xf32>
    %194 = vector.broadcast %193 : vector<1x16xf32> to vector<4x16xf32>
    %195 = arith.mulf %185, %194 : vector<4x16xf32>
    %196 = vector.broadcast %0 : vector<4x1xf32> to vector<4x16xf32>
    %197 = arith.mulf %195, %196 : vector<4x16xf32>
    %198 = vector.broadcast %1 : vector<4x1xf32> to vector<4x16xf32>
    %199 = arith.addf %197, %198 : vector<4x16xf32>
    %200 = vector.extract_strided_slice %2 {offsets = [0, 0], sizes = [16, 1], strides = [1, 1]} : vector<16x4xf32> to vector<16x1xf32>
    %201 = vector.extract_strided_slice %199 {offsets = [0, 0], sizes = [1, 16], strides = [1, 1]} : vector<4x16xf32> to vector<1x16xf32>
    %202 = vector.broadcast %200 : vector<16x1xf32> to vector<16x16xf32>
    %203 = vector.broadcast %201 : vector<1x16xf32> to vector<16x16xf32>
    %204 = arith.mulf %202, %203 : vector<16x16xf32>
    %205 = vector.extract_strided_slice %2 {offsets = [0, 1], sizes = [16, 1], strides = [1, 1]} : vector<16x4xf32> to vector<16x1xf32>
    %206 = vector.extract_strided_slice %199 {offsets = [1, 0], sizes = [1, 16], strides = [1, 1]} : vector<4x16xf32> to vector<1x16xf32>
    %207 = vector.broadcast %205 : vector<16x1xf32> to vector<16x16xf32>
    %208 = vector.broadcast %206 : vector<1x16xf32> to vector<16x16xf32>
    %209 = arith.mulf %207, %208 : vector<16x16xf32>
    %210 = arith.addf %204, %209 : vector<16x16xf32>
    %211 = vector.extract_strided_slice %2 {offsets = [0, 2], sizes = [16, 1], strides = [1, 1]} : vector<16x4xf32> to vector<16x1xf32>
    %212 = vector.extract_strided_slice %199 {offsets = [2, 0], sizes = [1, 16], strides = [1, 1]} : vector<4x16xf32> to vector<1x16xf32>
    %213 = vector.broadcast %211 : vector<16x1xf32> to vector<16x16xf32>
    %214 = vector.broadcast %212 : vector<1x16xf32> to vector<16x16xf32>
    %215 = arith.mulf %213, %214 : vector<16x16xf32>
    %216 = arith.addf %210, %215 : vector<16x16xf32>
    %217 = vector.extract_strided_slice %2 {offsets = [0, 3], sizes = [16, 1], strides = [1, 1]} : vector<16x4xf32> to vector<16x1xf32>
    %218 = vector.extract_strided_slice %199 {offsets = [3, 0], sizes = [1, 16], strides = [1, 1]} : vector<4x16xf32> to vector<1x16xf32>
    %219 = vector.broadcast %217 : vector<16x1xf32> to vector<16x16xf32>
    %220 = vector.broadcast %218 : vector<1x16xf32> to vector<16x16xf32>
    %221 = arith.mulf %219, %220 : vector<16x16xf32>
    %222 = arith.addf %216, %221 : vector<16x16xf32>
    %223 = vector.broadcast %3 : vector<16x1xf32> to vector<16x16xf32>
    %224 = arith.addf %222, %223 : vector<16x16xf32>
    %cst_55 = arith.constant 0.707106769 : f32
    %225 = vector.broadcast %cst_55 : f32 to vector<16x16xf32>
    %226 = arith.mulf %224, %225 : vector<16x16xf32>
    %227 = math.absf %226 : vector<16x16xf32>
    %cst_56 = arith.constant 0.327591091 : f32
    %228 = vector.broadcast %cst_56 : f32 to vector<16x16xf32>
    %229 = arith.mulf %228, %227 : vector<16x16xf32>
    %cst_57 = arith.constant 1.000000e+00 : f32
    %230 = vector.broadcast %cst_57 : f32 to vector<16x16xf32>
    %231 = arith.addf %230, %229 : vector<16x16xf32>
    %232 = tpu.reciprocal %231 {approx = true} : vector<16x16xf32> -> vector<16x16xf32>
    %233 = arith.mulf %231, %232 : vector<16x16xf32>
    %cst_58 = arith.constant 2.000000e+00 : f32
    %234 = vector.broadcast %cst_58 : f32 to vector<16x16xf32>
    %235 = arith.subf %234, %233 : vector<16x16xf32>
    %236 = arith.mulf %232, %235 : vector<16x16xf32>
    %cst_59 = arith.constant 1.06140542 : f32
    %237 = vector.broadcast %cst_59 : f32 to vector<16x16xf32>
    %238 = arith.mulf %237, %236 : vector<16x16xf32>
    %cst_60 = arith.constant -1.45315206 : f32
    %239 = vector.broadcast %cst_60 : f32 to vector<16x16xf32>
    %240 = arith.addf %238, %239 : vector<16x16xf32>
    %241 = arith.mulf %240, %236 : vector<16x16xf32>
    %cst_61 = arith.constant 1.42141378 : f32
    %242 = vector.broadcast %cst_61 : f32 to vector<16x16xf32>
    %243 = arith.addf %241, %242 : vector<16x16xf32>
    %244 = arith.mulf %243, %236 : vector<16x16xf32>
    %cst_62 = arith.constant -0.284496725 : f32
    %245 = vector.broadcast %cst_62 : f32 to vector<16x16xf32>
    %246 = arith.addf %244, %245 : vector<16x16xf32>
    %247 = arith.mulf %246, %236 : vector<16x16xf32>
    %cst_63 = arith.constant 0.254829586 : f32
    %248 = vector.broadcast %cst_63 : f32 to vector<16x16xf32>
    %249 = arith.addf %247, %248 : vector<16x16xf32>
    %250 = arith.mulf %249, %236 : vector<16x16xf32>
    %cst_64 = arith.constant 0.000000e+00 : f32
    %251 = vector.broadcast %cst_64 : f32 to vector<16x16xf32>
    %252 = arith.subf %251, %227 : vector<16x16xf32>
    %253 = arith.mulf %252, %227 : vector<16x16xf32>
    %254 = math.exp %253 : vector<16x16xf32>
    %255 = arith.mulf %250, %254 : vector<16x16xf32>
    %cst_65 = arith.constant 0.000000e+00 : f32
    %256 = vector.broadcast %cst_65 : f32 to vector<16x16xf32>
    %257 = arith.maximumf %224, %256 : vector<16x16xf32>
    %cst_66 = arith.constant 0.707106769 : f32
    %258 = vector.broadcast %cst_66 : f32 to vector<16x16xf32>
    %259 = arith.mulf %227, %258 : vector<16x16xf32>
    %260 = arith.mulf %259, %255 : vector<16x16xf32>
    %261 = arith.subf %257, %260 : vector<16x16xf32>
    %cst_67 = arith.constant 0.000000e+00 : f32
    %262 = vector.broadcast %cst_67 : f32 to vector<16x16xf32>
    %263 = arith.select %179, %261, %262 : vector<16x16xf32>
    %264 = tpu.concatenate %178, %87, %263 in 1 : vector<16x16xf32>, vector<16x128xf32>, vector<16x16xf32> -> vector<16x160xf32>
    %265 = tpu.iota {dimensions = array<i32: 1>} : vector<1x160xi32>
    %c16_i32 = arith.constant 16 : i32
    %c0_i32_68 = arith.constant 0 : i32
    %266 = arith.cmpi eq, %c16_i32, %c0_i32_68 : i32
    %c1_i32_69 = arith.constant 1 : i32
    %267 = arith.select %266, %c1_i32_69, %c16_i32 : i32
    %268 = vector.broadcast %267 : i32 to vector<1x160xi32>
    %269 = arith.remsi %265, %268 : vector<1x160xi32>
    %c0_i32_70 = arith.constant 0 : i32
    %270 = vector.broadcast %c0_i32_70 : i32 to vector<1x160xi32>
    %271 = arith.cmpi ne, %269, %270 : vector<1x160xi32>
    %c0_i32_71 = arith.constant 0 : i32
    %272 = vector.broadcast %c0_i32_71 : i32 to vector<1x160xi32>
    %273 = arith.cmpi slt, %269, %272 : vector<1x160xi32>
    %c0_i32_72 = arith.constant 0 : i32
    %274 = arith.cmpi slt, %267, %c0_i32_72 : i32
    %275 = vector.broadcast %274 : i1 to vector<1x160xi1>
    %276 = vector.broadcast %275 : vector<1x160xi1> to vector<1x160xi1>
    %277 = arith.xori %273, %276 : vector<1x160xi1>
    %278 = arith.andi %277, %271 : vector<1x160xi1>
    %279 = vector.broadcast %267 : i32 to vector<1x160xi32>
    %280 = arith.addi %269, %279 : vector<1x160xi32>
    %281 = arith.select %278, %280, %269 : vector<1x160xi1>, vector<1x160xi32>
    %c1_i32_73 = arith.constant 1 : i32
    %282 = vector.broadcast %c1_i32_73 : i32 to vector<1x160xi32>
    %283 = arith.cmpi sge, %281, %282 : vector<1x160xi32>
    %c14_i32 = arith.constant 14 : i32
    %284 = vector.broadcast %c14_i32 : i32 to vector<1x160xi32>
    %285 = arith.cmpi sle, %281, %284 : vector<1x160xi32>
    %c0_74 = arith.constant 0 : index
    %c0_75 = arith.constant 0 : index
    %286 = vector.load %arg9[%c0_74, %c0_75] : memref<16x9xf32, #tpu.memory_space<vmem>>, vector<16x9xf32>
    %cst_76 = arith.constant 0.000000e+00 : f32
    %287 = vector.broadcast %cst_76 : f32 to vector<16x16xf32>
    %288 = vector.extract_strided_slice %264 {offsets = [0, 0], sizes = [16, 144], strides = [1, 1]} : vector<16x160xf32> to vector<16x144xf32>
    %289 = tpu.concatenate %287, %288 in 1 : vector<16x16xf32>, vector<16x144xf32> -> vector<16x160xf32>
    %290 = vector.extract_strided_slice %286 {offsets = [0, 1], sizes = [16, 1], strides = [1, 1]} : vector<16x9xf32> to vector<16x1xf32>
    %291 = vector.broadcast %290 : vector<16x1xf32> to vector<16x160xf32>
    %292 = arith.mulf %289, %291 : vector<16x160xf32>
    %293 = vector.extract_strided_slice %286 {offsets = [0, 4], sizes = [16, 1], strides = [1, 1]} : vector<16x9xf32> to vector<16x1xf32>
    %294 = vector.broadcast %293 : vector<16x1xf32> to vector<16x160xf32>
    %295 = arith.mulf %264, %294 : vector<16x160xf32>
    %296 = arith.addf %292, %295 : vector<16x160xf32>
    %cst_77 = arith.constant 0.000000e+00 : f32
    %297 = vector.broadcast %cst_77 : f32 to vector<16x16xf32>
    %298 = vector.extract_strided_slice %264 {offsets = [0, 16], sizes = [16, 144], strides = [1, 1]} : vector<16x160xf32> to vector<16x144xf32>
    %299 = tpu.concatenate %298, %297 in 1 : vector<16x144xf32>, vector<16x16xf32> -> vector<16x160xf32>
    %300 = vector.extract_strided_slice %286 {offsets = [0, 7], sizes = [16, 1], strides = [1, 1]} : vector<16x9xf32> to vector<16x1xf32>
    %301 = vector.broadcast %300 : vector<16x1xf32> to vector<16x160xf32>
    %302 = arith.mulf %299, %301 : vector<16x160xf32>
    %303 = arith.addf %296, %302 : vector<16x160xf32>
    %cst_78 = arith.constant 0.000000e+00 : f32
    %304 = vector.broadcast %cst_78 : f32 to vector<16x17xf32>
    %305 = vector.extract_strided_slice %264 {offsets = [0, 0], sizes = [16, 143], strides = [1, 1]} : vector<16x160xf32> to vector<16x143xf32>
    %306 = tpu.concatenate %304, %305 in 1 : vector<16x17xf32>, vector<16x143xf32> -> vector<16x160xf32>
    %307 = vector.extract_strided_slice %286 {offsets = [0, 0], sizes = [16, 1], strides = [1, 1]} : vector<16x9xf32> to vector<16x1xf32>
    %308 = vector.broadcast %307 : vector<16x1xf32> to vector<16x160xf32>
    %309 = arith.mulf %306, %308 : vector<16x160xf32>
    %cst_79 = arith.constant 0.000000e+00 : f32
    %310 = vector.broadcast %cst_79 : f32 to vector<16x1xf32>
    %311 = vector.extract_strided_slice %264 {offsets = [0, 0], sizes = [16, 159], strides = [1, 1]} : vector<16x160xf32> to vector<16x159xf32>
    %312 = tpu.concatenate %310, %311 in 1 : vector<16x1xf32>, vector<16x159xf32> -> vector<16x160xf32>
    %313 = vector.extract_strided_slice %286 {offsets = [0, 3], sizes = [16, 1], strides = [1, 1]} : vector<16x9xf32> to vector<16x1xf32>
    %314 = vector.broadcast %313 : vector<16x1xf32> to vector<16x160xf32>
    %315 = arith.mulf %312, %314 : vector<16x160xf32>
    %316 = arith.addf %309, %315 : vector<16x160xf32>
    %cst_80 = arith.constant 0.000000e+00 : f32
    %317 = vector.broadcast %cst_80 : f32 to vector<16x15xf32>
    %318 = vector.extract_strided_slice %264 {offsets = [0, 15], sizes = [16, 145], strides = [1, 1]} : vector<16x160xf32> to vector<16x145xf32>
    %319 = tpu.concatenate %318, %317 in 1 : vector<16x145xf32>, vector<16x15xf32> -> vector<16x160xf32>
    %320 = vector.extract_strided_slice %286 {offsets = [0, 6], sizes = [16, 1], strides = [1, 1]} : vector<16x9xf32> to vector<16x1xf32>
    %321 = vector.broadcast %320 : vector<16x1xf32> to vector<16x160xf32>
    %322 = arith.mulf %319, %321 : vector<16x160xf32>
    %323 = arith.addf %316, %322 : vector<16x160xf32>
    %cst_81 = arith.constant 0.000000e+00 : f32
    %324 = vector.broadcast %cst_81 : f32 to vector<16x15xf32>
    %325 = vector.extract_strided_slice %264 {offsets = [0, 0], sizes = [16, 145], strides = [1, 1]} : vector<16x160xf32> to vector<16x145xf32>
    %326 = tpu.concatenate %324, %325 in 1 : vector<16x15xf32>, vector<16x145xf32> -> vector<16x160xf32>
    %327 = vector.extract_strided_slice %286 {offsets = [0, 2], sizes = [16, 1], strides = [1, 1]} : vector<16x9xf32> to vector<16x1xf32>
    %328 = vector.broadcast %327 : vector<16x1xf32> to vector<16x160xf32>
    %329 = arith.mulf %326, %328 : vector<16x160xf32>
    %cst_82 = arith.constant 0.000000e+00 : f32
    %330 = vector.broadcast %cst_82 : f32 to vector<16x1xf32>
    %331 = vector.extract_strided_slice %264 {offsets = [0, 1], sizes = [16, 159], strides = [1, 1]} : vector<16x160xf32> to vector<16x159xf32>
    %332 = tpu.concatenate %331, %330 in 1 : vector<16x159xf32>, vector<16x1xf32> -> vector<16x160xf32>
    %333 = vector.extract_strided_slice %286 {offsets = [0, 5], sizes = [16, 1], strides = [1, 1]} : vector<16x9xf32> to vector<16x1xf32>
    %334 = vector.broadcast %333 : vector<16x1xf32> to vector<16x160xf32>
    %335 = arith.mulf %332, %334 : vector<16x160xf32>
    %336 = arith.addf %329, %335 : vector<16x160xf32>
    %cst_83 = arith.constant 0.000000e+00 : f32
    %337 = vector.broadcast %cst_83 : f32 to vector<16x17xf32>
    %338 = vector.extract_strided_slice %264 {offsets = [0, 17], sizes = [16, 143], strides = [1, 1]} : vector<16x160xf32> to vector<16x143xf32>
    %339 = tpu.concatenate %338, %337 in 1 : vector<16x143xf32>, vector<16x17xf32> -> vector<16x160xf32>
    %340 = vector.extract_strided_slice %286 {offsets = [0, 8], sizes = [16, 1], strides = [1, 1]} : vector<16x9xf32> to vector<16x1xf32>
    %341 = vector.broadcast %340 : vector<16x1xf32> to vector<16x160xf32>
    %342 = arith.mulf %339, %341 : vector<16x160xf32>
    %343 = arith.addf %336, %342 : vector<16x160xf32>
    %cst_84 = arith.constant 0.000000e+00 : f32
    %344 = vector.shape_cast %283 : vector<1x160xi1> to vector<1x160xi1>
    %345 = vector.broadcast %344 : vector<1x160xi1> to vector<16x160xi1>
    %346 = vector.broadcast %cst_84 : f32 to vector<16x160xf32>
    %347 = arith.select %345, %323, %346 : vector<16x160xi1>, vector<16x160xf32>
    %348 = arith.addf %303, %347 : vector<16x160xf32>
    %cst_85 = arith.constant 0.000000e+00 : f32
    %349 = vector.shape_cast %285 : vector<1x160xi1> to vector<1x160xi1>
    %350 = vector.broadcast %349 : vector<1x160xi1> to vector<16x160xi1>
    %351 = vector.broadcast %cst_85 : f32 to vector<16x160xf32>
    %352 = arith.select %350, %343, %351 : vector<16x160xi1>, vector<16x160xf32>
    %353 = arith.addf %348, %352 : vector<16x160xf32>
    %354 = vector.extract_strided_slice %353 {offsets = [0, 16], sizes = [16, 128], strides = [1, 1]} : vector<16x160xf32> to vector<16x128xf32>
    %c0_86 = arith.constant 0 : index
    %c0_87 = arith.constant 0 : index
    %355 = vector.load %arg10[%c0_86, %c0_87] : memref<16x1xf32, #tpu.memory_space<vmem>>, vector<16x1xf32>
    %356 = vector.broadcast %355 : vector<16x1xf32> to vector<16x128xf32>
    %357 = arith.addf %354, %356 : vector<16x128xf32>
    %cst_88 = arith.constant 0.707106769 : f32
    %358 = vector.broadcast %cst_88 : f32 to vector<16x128xf32>
    %359 = arith.mulf %357, %358 : vector<16x128xf32>
    %360 = math.absf %359 : vector<16x128xf32>
    %cst_89 = arith.constant 0.327591091 : f32
    %361 = vector.broadcast %cst_89 : f32 to vector<16x128xf32>
    %362 = arith.mulf %361, %360 : vector<16x128xf32>
    %cst_90 = arith.constant 1.000000e+00 : f32
    %363 = vector.broadcast %cst_90 : f32 to vector<16x128xf32>
    %364 = arith.addf %363, %362 : vector<16x128xf32>
    %365 = tpu.reciprocal %364 {approx = true} : vector<16x128xf32> -> vector<16x128xf32>
    %366 = arith.mulf %364, %365 : vector<16x128xf32>
    %cst_91 = arith.constant 2.000000e+00 : f32
    %367 = vector.broadcast %cst_91 : f32 to vector<16x128xf32>
    %368 = arith.subf %367, %366 : vector<16x128xf32>
    %369 = arith.mulf %365, %368 : vector<16x128xf32>
    %cst_92 = arith.constant 1.06140542 : f32
    %370 = vector.broadcast %cst_92 : f32 to vector<16x128xf32>
    %371 = arith.mulf %370, %369 : vector<16x128xf32>
    %cst_93 = arith.constant -1.45315206 : f32
    %372 = vector.broadcast %cst_93 : f32 to vector<16x128xf32>
    %373 = arith.addf %371, %372 : vector<16x128xf32>
    %374 = arith.mulf %373, %369 : vector<16x128xf32>
    %cst_94 = arith.constant 1.42141378 : f32
    %375 = vector.broadcast %cst_94 : f32 to vector<16x128xf32>
    %376 = arith.addf %374, %375 : vector<16x128xf32>
    %377 = arith.mulf %376, %369 : vector<16x128xf32>
    %cst_95 = arith.constant -0.284496725 : f32
    %378 = vector.broadcast %cst_95 : f32 to vector<16x128xf32>
    %379 = arith.addf %377, %378 : vector<16x128xf32>
    %380 = arith.mulf %379, %369 : vector<16x128xf32>
    %cst_96 = arith.constant 0.254829586 : f32
    %381 = vector.broadcast %cst_96 : f32 to vector<16x128xf32>
    %382 = arith.addf %380, %381 : vector<16x128xf32>
    %383 = arith.mulf %382, %369 : vector<16x128xf32>
    %cst_97 = arith.constant 0.000000e+00 : f32
    %384 = vector.broadcast %cst_97 : f32 to vector<16x128xf32>
    %385 = arith.subf %384, %360 : vector<16x128xf32>
    %386 = arith.mulf %385, %360 : vector<16x128xf32>
    %387 = math.exp %386 : vector<16x128xf32>
    %388 = arith.mulf %383, %387 : vector<16x128xf32>
    %cst_98 = arith.constant 0.000000e+00 : f32
    %389 = vector.broadcast %cst_98 : f32 to vector<16x128xf32>
    %390 = arith.maximumf %357, %389 : vector<16x128xf32>
    %cst_99 = arith.constant 0.707106769 : f32
    %391 = vector.broadcast %cst_99 : f32 to vector<16x128xf32>
    %392 = arith.mulf %360, %391 : vector<16x128xf32>
    %393 = arith.mulf %392, %388 : vector<16x128xf32>
    %394 = arith.subf %390, %393 : vector<16x128xf32>
    %395 = arith.addf %87, %394 : vector<16x128xf32>
    %c0_100 = arith.constant 0 : index
    %c0_101 = arith.constant 0 : index
    %396 = vector.load %arg11[%c0_100, %c0_101] : memref<4x16xf32, #tpu.memory_space<vmem>>, vector<4x16xf32>
    %397 = vector.extract_strided_slice %396 {offsets = [0, 0], sizes = [4, 1], strides = [1, 1]} : vector<4x16xf32> to vector<4x1xf32>
    %398 = vector.extract_strided_slice %395 {offsets = [0, 0], sizes = [1, 128], strides = [1, 1]} : vector<16x128xf32> to vector<1x128xf32>
    %399 = vector.broadcast %397 : vector<4x1xf32> to vector<4x128xf32>
    %400 = vector.broadcast %398 : vector<1x128xf32> to vector<4x128xf32>
    %401 = arith.mulf %399, %400 : vector<4x128xf32>
    %402 = vector.extract_strided_slice %396 {offsets = [0, 1], sizes = [4, 1], strides = [1, 1]} : vector<4x16xf32> to vector<4x1xf32>
    %403 = vector.extract_strided_slice %395 {offsets = [1, 0], sizes = [1, 128], strides = [1, 1]} : vector<16x128xf32> to vector<1x128xf32>
    %404 = vector.broadcast %402 : vector<4x1xf32> to vector<4x128xf32>
    %405 = vector.broadcast %403 : vector<1x128xf32> to vector<4x128xf32>
    %406 = arith.mulf %404, %405 : vector<4x128xf32>
    %407 = arith.addf %401, %406 : vector<4x128xf32>
    %408 = vector.extract_strided_slice %396 {offsets = [0, 2], sizes = [4, 1], strides = [1, 1]} : vector<4x16xf32> to vector<4x1xf32>
    %409 = vector.extract_strided_slice %395 {offsets = [2, 0], sizes = [1, 128], strides = [1, 1]} : vector<16x128xf32> to vector<1x128xf32>
    %410 = vector.broadcast %408 : vector<4x1xf32> to vector<4x128xf32>
    %411 = vector.broadcast %409 : vector<1x128xf32> to vector<4x128xf32>
    %412 = arith.mulf %410, %411 : vector<4x128xf32>
    %413 = arith.addf %407, %412 : vector<4x128xf32>
    %414 = vector.extract_strided_slice %396 {offsets = [0, 3], sizes = [4, 1], strides = [1, 1]} : vector<4x16xf32> to vector<4x1xf32>
    %415 = vector.extract_strided_slice %395 {offsets = [3, 0], sizes = [1, 128], strides = [1, 1]} : vector<16x128xf32> to vector<1x128xf32>
    %416 = vector.broadcast %414 : vector<4x1xf32> to vector<4x128xf32>
    %417 = vector.broadcast %415 : vector<1x128xf32> to vector<4x128xf32>
    %418 = arith.mulf %416, %417 : vector<4x128xf32>
    %419 = arith.addf %413, %418 : vector<4x128xf32>
    %420 = vector.extract_strided_slice %396 {offsets = [0, 4], sizes = [4, 1], strides = [1, 1]} : vector<4x16xf32> to vector<4x1xf32>
    %421 = vector.extract_strided_slice %395 {offsets = [4, 0], sizes = [1, 128], strides = [1, 1]} : vector<16x128xf32> to vector<1x128xf32>
    %422 = vector.broadcast %420 : vector<4x1xf32> to vector<4x128xf32>
    %423 = vector.broadcast %421 : vector<1x128xf32> to vector<4x128xf32>
    %424 = arith.mulf %422, %423 : vector<4x128xf32>
    %425 = arith.addf %419, %424 : vector<4x128xf32>
    %426 = vector.extract_strided_slice %396 {offsets = [0, 5], sizes = [4, 1], strides = [1, 1]} : vector<4x16xf32> to vector<4x1xf32>
    %427 = vector.extract_strided_slice %395 {offsets = [5, 0], sizes = [1, 128], strides = [1, 1]} : vector<16x128xf32> to vector<1x128xf32>
    %428 = vector.broadcast %426 : vector<4x1xf32> to vector<4x128xf32>
    %429 = vector.broadcast %427 : vector<1x128xf32> to vector<4x128xf32>
    %430 = arith.mulf %428, %429 : vector<4x128xf32>
    %431 = arith.addf %425, %430 : vector<4x128xf32>
    %432 = vector.extract_strided_slice %396 {offsets = [0, 6], sizes = [4, 1], strides = [1, 1]} : vector<4x16xf32> to vector<4x1xf32>
    %433 = vector.extract_strided_slice %395 {offsets = [6, 0], sizes = [1, 128], strides = [1, 1]} : vector<16x128xf32> to vector<1x128xf32>
    %434 = vector.broadcast %432 : vector<4x1xf32> to vector<4x128xf32>
    %435 = vector.broadcast %433 : vector<1x128xf32> to vector<4x128xf32>
    %436 = arith.mulf %434, %435 : vector<4x128xf32>
    %437 = arith.addf %431, %436 : vector<4x128xf32>
    %438 = vector.extract_strided_slice %396 {offsets = [0, 7], sizes = [4, 1], strides = [1, 1]} : vector<4x16xf32> to vector<4x1xf32>
    %439 = vector.extract_strided_slice %395 {offsets = [7, 0], sizes = [1, 128], strides = [1, 1]} : vector<16x128xf32> to vector<1x128xf32>
    %440 = vector.broadcast %438 : vector<4x1xf32> to vector<4x128xf32>
    %441 = vector.broadcast %439 : vector<1x128xf32> to vector<4x128xf32>
    %442 = arith.mulf %440, %441 : vector<4x128xf32>
    %443 = arith.addf %437, %442 : vector<4x128xf32>
    %444 = vector.extract_strided_slice %396 {offsets = [0, 8], sizes = [4, 1], strides = [1, 1]} : vector<4x16xf32> to vector<4x1xf32>
    %445 = vector.extract_strided_slice %395 {offsets = [8, 0], sizes = [1, 128], strides = [1, 1]} : vector<16x128xf32> to vector<1x128xf32>
    %446 = vector.broadcast %444 : vector<4x1xf32> to vector<4x128xf32>
    %447 = vector.broadcast %445 : vector<1x128xf32> to vector<4x128xf32>
    %448 = arith.mulf %446, %447 : vector<4x128xf32>
    %449 = arith.addf %443, %448 : vector<4x128xf32>
    %450 = vector.extract_strided_slice %396 {offsets = [0, 9], sizes = [4, 1], strides = [1, 1]} : vector<4x16xf32> to vector<4x1xf32>
    %451 = vector.extract_strided_slice %395 {offsets = [9, 0], sizes = [1, 128], strides = [1, 1]} : vector<16x128xf32> to vector<1x128xf32>
    %452 = vector.broadcast %450 : vector<4x1xf32> to vector<4x128xf32>
    %453 = vector.broadcast %451 : vector<1x128xf32> to vector<4x128xf32>
    %454 = arith.mulf %452, %453 : vector<4x128xf32>
    %455 = arith.addf %449, %454 : vector<4x128xf32>
    %456 = vector.extract_strided_slice %396 {offsets = [0, 10], sizes = [4, 1], strides = [1, 1]} : vector<4x16xf32> to vector<4x1xf32>
    %457 = vector.extract_strided_slice %395 {offsets = [10, 0], sizes = [1, 128], strides = [1, 1]} : vector<16x128xf32> to vector<1x128xf32>
    %458 = vector.broadcast %456 : vector<4x1xf32> to vector<4x128xf32>
    %459 = vector.broadcast %457 : vector<1x128xf32> to vector<4x128xf32>
    %460 = arith.mulf %458, %459 : vector<4x128xf32>
    %461 = arith.addf %455, %460 : vector<4x128xf32>
    %462 = vector.extract_strided_slice %396 {offsets = [0, 11], sizes = [4, 1], strides = [1, 1]} : vector<4x16xf32> to vector<4x1xf32>
    %463 = vector.extract_strided_slice %395 {offsets = [11, 0], sizes = [1, 128], strides = [1, 1]} : vector<16x128xf32> to vector<1x128xf32>
    %464 = vector.broadcast %462 : vector<4x1xf32> to vector<4x128xf32>
    %465 = vector.broadcast %463 : vector<1x128xf32> to vector<4x128xf32>
    %466 = arith.mulf %464, %465 : vector<4x128xf32>
    %467 = arith.addf %461, %466 : vector<4x128xf32>
    %468 = vector.extract_strided_slice %396 {offsets = [0, 12], sizes = [4, 1], strides = [1, 1]} : vector<4x16xf32> to vector<4x1xf32>
    %469 = vector.extract_strided_slice %395 {offsets = [12, 0], sizes = [1, 128], strides = [1, 1]} : vector<16x128xf32> to vector<1x128xf32>
    %470 = vector.broadcast %468 : vector<4x1xf32> to vector<4x128xf32>
    %471 = vector.broadcast %469 : vector<1x128xf32> to vector<4x128xf32>
    %472 = arith.mulf %470, %471 : vector<4x128xf32>
    %473 = arith.addf %467, %472 : vector<4x128xf32>
    %474 = vector.extract_strided_slice %396 {offsets = [0, 13], sizes = [4, 1], strides = [1, 1]} : vector<4x16xf32> to vector<4x1xf32>
    %475 = vector.extract_strided_slice %395 {offsets = [13, 0], sizes = [1, 128], strides = [1, 1]} : vector<16x128xf32> to vector<1x128xf32>
    %476 = vector.broadcast %474 : vector<4x1xf32> to vector<4x128xf32>
    %477 = vector.broadcast %475 : vector<1x128xf32> to vector<4x128xf32>
    %478 = arith.mulf %476, %477 : vector<4x128xf32>
    %479 = arith.addf %473, %478 : vector<4x128xf32>
    %480 = vector.extract_strided_slice %396 {offsets = [0, 14], sizes = [4, 1], strides = [1, 1]} : vector<4x16xf32> to vector<4x1xf32>
    %481 = vector.extract_strided_slice %395 {offsets = [14, 0], sizes = [1, 128], strides = [1, 1]} : vector<16x128xf32> to vector<1x128xf32>
    %482 = vector.broadcast %480 : vector<4x1xf32> to vector<4x128xf32>
    %483 = vector.broadcast %481 : vector<1x128xf32> to vector<4x128xf32>
    %484 = arith.mulf %482, %483 : vector<4x128xf32>
    %485 = arith.addf %479, %484 : vector<4x128xf32>
    %486 = vector.extract_strided_slice %396 {offsets = [0, 15], sizes = [4, 1], strides = [1, 1]} : vector<4x16xf32> to vector<4x1xf32>
    %487 = vector.extract_strided_slice %395 {offsets = [15, 0], sizes = [1, 128], strides = [1, 1]} : vector<16x128xf32> to vector<1x128xf32>
    %488 = vector.broadcast %486 : vector<4x1xf32> to vector<4x128xf32>
    %489 = vector.broadcast %487 : vector<1x128xf32> to vector<4x128xf32>
    %490 = arith.mulf %488, %489 : vector<4x128xf32>
    %491 = arith.addf %485, %490 : vector<4x128xf32>
    %c0_102 = arith.constant 0 : index
    %c0_103 = arith.constant 0 : index
    %492 = vector.load %arg12[%c0_102, %c0_103] : memref<4x1xf32, #tpu.memory_space<vmem>>, vector<4x1xf32>
    %493 = vector.broadcast %492 : vector<4x1xf32> to vector<4x128xf32>
    %494 = arith.addf %491, %493 : vector<4x128xf32>
    %c0_104 = arith.constant 0 : index
    %c0_105 = arith.constant 0 : index
    %c0_106 = arith.constant 0 : index
    %495 = vector.load %arg13[%c0_104, %c0_105, %c0_106] : memref<1x4x128xf32, #tpu.memory_space<vmem>>, vector<1x4x128xf32>
    %496 = vector.shape_cast %495 : vector<1x4x128xf32> to vector<4x128xf32>
    %497 = vector.shape_cast %494 : vector<4x128xf32> to vector<1x4x128xf32>
    tpu.vector_store %arg13[%c0_104, %c0_105, %c0_106], %497 {strides = array<i32>} : memref<1x4x128xf32, #tpu.memory_space<vmem>>, vector<1x4x128xf32>,
    return
  }
  func.func @transform_0(%arg0: i32, %arg1: i32) -> (i32, i32, i32) {
    %c0_i32 = arith.constant 0 : i32
    %c0_i32_0 = arith.constant 0 : i32
    return %arg0, %c0_i32, %arg1 : i32, i32, i32
  }
  func.func @transform_1(%arg0: i32, %arg1: i32) -> (i32, i32, i32) {
    %c1_i32 = arith.constant 1 : i32
    %0 = arith.subi %arg1, %c1_i32 : i32
    %c0_i32 = arith.constant 0 : i32
    %1 = arith.maxsi %0, %c0_i32 : i32
    %c0_i32_0 = arith.constant 0 : i32
    %c0_i32_1 = arith.constant 0 : i32
    return %arg0, %c0_i32_0, %1 : i32, i32, i32
  }
  func.func @transform_2(%arg0: i32, %arg1: i32) -> (i32, i32, i32) {
    %c1_i32 = arith.constant 1 : i32
    %0 = arith.addi %arg1, %c1_i32 : i32
    %c1_i32_0 = arith.constant 1 : i32
    %1 = arith.minsi %0, %c1_i32_0 : i32
    %c0_i32 = arith.constant 0 : i32
    %c0_i32_1 = arith.constant 0 : i32
    return %arg0, %c0_i32, %1 : i32, i32, i32
  }
  func.func @transform_3(%arg0: i32, %arg1: i32) -> (i32, i32) {
    %c0_i32 = arith.constant 0 : i32
    %c0_i32_0 = arith.constant 0 : i32
    %c0_i32_1 = arith.constant 0 : i32
    return %c0_i32, %c0_i32_0 : i32, i32
  }
  func.func @transform_4(%arg0: i32, %arg1: i32) -> (i32, i32) {
    %c0_i32 = arith.constant 0 : i32
    %c0_i32_0 = arith.constant 0 : i32
    %c0_i32_1 = arith.constant 0 : i32
    return %c0_i32, %c0_i32_0 : i32, i32
  }
  func.func @transform_5(%arg0: i32, %arg1: i32) -> (i32, i32) {
    %c0_i32 = arith.constant 0 : i32
    %c0_i32_0 = arith.constant 0 : i32
    %c0_i32_1 = arith.constant 0 : i32
    return %c0_i32, %c0_i32_0 : i32, i32
  }
  func.func @transform_6(%arg0: i32, %arg1: i32) -> (i32, i32) {
    %c0_i32 = arith.constant 0 : i32
    %c0_i32_0 = arith.constant 0 : i32
    %c0_i32_1 = arith.constant 0 : i32
    return %c0_i32, %c0_i32_0 : i32, i32
  }
  func.func @transform_7(%arg0: i32, %arg1: i32) -> (i32, i32) {
    %c0_i32 = arith.constant 0 : i32
    %c0_i32_0 = arith.constant 0 : i32
    %c0_i32_1 = arith.constant 0 : i32
    return %c0_i32, %c0_i32_0 : i32, i32
  }
  func.func @transform_8(%arg0: i32, %arg1: i32) -> (i32, i32) {
    %c0_i32 = arith.constant 0 : i32
    %c0_i32_0 = arith.constant 0 : i32
    %c0_i32_1 = arith.constant 0 : i32
    return %c0_i32, %c0_i32_0 : i32, i32
  }
  func.func @transform_9(%arg0: i32, %arg1: i32) -> (i32, i32) {
    %c0_i32 = arith.constant 0 : i32
    %c0_i32_0 = arith.constant 0 : i32
    %c0_i32_1 = arith.constant 0 : i32
    return %c0_i32, %c0_i32_0 : i32, i32
  }
  func.func @transform_10(%arg0: i32, %arg1: i32) -> (i32, i32) {
    %c0_i32 = arith.constant 0 : i32
    %c0_i32_0 = arith.constant 0 : i32
    %c0_i32_1 = arith.constant 0 : i32
    return %c0_i32, %c0_i32_0 : i32, i32
  }
  func.func @transform_11(%arg0: i32, %arg1: i32) -> (i32, i32, i32) {
    %c0_i32 = arith.constant 0 : i32
    %c0_i32_0 = arith.constant 0 : i32
    return %arg0, %c0_i32, %arg1 : i32, i32, i32
  }
}

</mosaic_0001>

<llo_original>
// kernel: tpu_custom_call.1
$region0: #{tpu_custom_call.1}
  #allocation0 [shape = 'u32[]', space=smem, size = 0x4, offset = 0x4, fixed_abs, tag = 'smem constant byte address 0x4 - core index']
  #allocation1 [shape = 'u32[144,128]{1,0:T(1,128)}', space=vmem, size = 0x12000, scoped, tag = 'internal scratch']
  %s0 = inlined_call_operand.vmem [shape: f32[2,4,256], index: 0, kind: input, shape index: {}]
  %s1 = inlined_call_operand.vmem [shape: f32[2,4,256], index: 1, kind: input, shape index: {}]
  %s2 = inlined_call_operand.vmem [shape: f32[2,4,256], index: 2, kind: input, shape index: {}]
  %s3 = inlined_call_operand.vmem [shape: f32[4,1], index: 3, kind: input, shape index: {}]
  %s4 = inlined_call_operand.vmem [shape: f32[4,1], index: 4, kind: input, shape index: {}]
  %s5 = inlined_call_operand.vmem [shape: f32[16,4], index: 5, kind: input, shape index: {}]
  %s6 = inlined_call_operand.vmem [shape: f32[16,1], index: 6, kind: input, shape index: {}]
  %s7 = inlined_call_operand.vmem [shape: f32[16,9], index: 7, kind: input, shape index: {}]
  %s8 = inlined_call_operand.vmem [shape: f32[16,1], index: 8, kind: input, shape index: {}]
  %s9 = inlined_call_operand.vmem [shape: f32[4,16], index: 9, kind: input, shape index: {}]
  %s10 = inlined_call_operand.vmem [shape: f32[4,1], index: 10, kind: input, shape index: {}]
  %s11 = inlined_call_operand.hbm [shape: f32[2,4,256], index: 11, kind: output, shape index: {}]
  %s12 = sld [smem:[#allocation0]]
  $region77: #{tpu_custom_call.1} parent=0
    _
  %s14 = ssub.s32 1, %s12
  %s15 = scalar_select 0, %s14, %s12
  $region1: #{tpu_custom_call.1} parent=0
    #allocation2 [shape = 'u8[4096]{0}', space=vmem, size = 0x1000, scoped, tag = 'output window, operand 0']
    #allocation3 [shape = 's32[2]{0}', space=sflag, size = 0x8, scoped, tag = 'scoped memory for tpu_custom_call.1']
    %16 = vsyncpa [#allocation3], 0
    %s17 = scalar_lea.sflag [#allocation3], 1
    %18 = vsyncpa %s17, 0
    loop: start=0, step=1, limit=6
    $region2: #{tpu_custom_call.1} parent=1 // loop_pre_header
      _
    $region3: #{tpu_custom_call.1} parent=1 // loop_header
      %s20 = sphi 0, %s24
      %p21 = scmp.ge.s32.totalorder %s20, 6
      %s27 = sphi 0, %s39
      %s28 = sphi 0, %s35
      %s29 = sphi 0, %s27
      %s30 = sphi 0, %s28
      %s31 = sphi 0, %s29
      %s32 = sphi 0, %s30
      %s44 = sphi 0, %s46
      %s47 = sphi 0, %s44
      %s48 = sphi 0, %s47
      %s64 = sphi 0, %s48
      %s78 = sphi 0, %s80
      %s81 = sphi 0, %s78
      %s82 = sphi 0, %s81
      %s98 = sphi 0, %s82
      %s112 = sphi 0, %s114
      %s115 = sphi 0, %s112
      %s116 = sphi 0, %s115
      %s132 = sphi 0, %s116
      %s136 = sphi 0, %s136
      %s138 = sphi 0, %s136
      %s139 = sphi 0, %s138
      %s153 = sphi 0, %s139
      %s157 = sphi 0, %s157
      %s159 = sphi 0, %s157
      %s160 = sphi 0, %s159
      %s174 = sphi 0, %s160
      %s178 = sphi 0, %s178
      %s180 = sphi 0, %s178
      %s181 = sphi 0, %s180
      %s195 = sphi 0, %s181
      %s199 = sphi 0, %s199
      %s201 = sphi 0, %s199
      %s202 = sphi 0, %s201
      %s216 = sphi 0, %s202
      %s220 = sphi 0, %s220
      %s222 = sphi 0, %s220
      %s223 = sphi 0, %s222
      %s237 = sphi 0, %s223
      %s241 = sphi 0, %s241
      %s243 = sphi 0, %s241
      %s244 = sphi 0, %s243
      %s258 = sphi 0, %s244
      %s262 = sphi 0, %s262
      %s264 = sphi 0, %s262
      %s265 = sphi 0, %s264
      %s279 = sphi 0, %s265
      %s283 = sphi 0, %s283
      %s285 = sphi 0, %s283
      %s286 = sphi 0, %s285
      %s300 = sphi 0, %s286
      %s308 = sphi 0, %s310
      %s311 = sphi 0, %s308
      %s312 = sphi 0, %s311
      %s328 = sphi 0, %s312
    $region4: #{tpu_custom_call.1} parent=1 // loop_header_branch
      %23 = sbr.rel (%p21) target = $region8
    $region5: #{tpu_custom_call.1} parent=1 // loop_body
      %s25 = ssub.s32 %s20, 1
      %s26 = ssub.s32 %s20, 2
      %s33 = sadd.s32 1, %s28
      %p34 = scmp.ge.s32.totalorder %s33, 2
      %s35 = scalar_select %p34, 0, %s33
      %s36 = sadd.s32 1, %s27
      %s37 = scalar_select %p34, %s36, %s27
      %p38 = scmp.ge.s32.totalorder %s37, 2
      %s39 = scalar_select %p38, 0, %s37
      %s40 = ssub.s32 %s27, %s39
      %s41 = ssub.s32 %s28, %s35
      %s42 = sor.u32 %s40, %s41
      %p43 = scmp.eq.s32.totalorder %s42, 0
      %s45 = sadd.s32 %s44, 1
      %s46 = scalar_select %p43, %s44, %s45
      %p49 = pneg %p43
      %p50 = scmp.eq.s32.totalorder %s20, 3
      %p51 = por %p49, %p50
      %p52 = scmp.ne.s32.totalorder %s44, %s47
      %p53 = scmp.eq.s32.totalorder %s20, 0
      %p54 = por %p52, %p53
      %p55 = scmp.ne.s32.totalorder %s44, %s47
      %p56 = scmp.eq.s32.totalorder %s25, 3
      %p57 = por %p55, %p56
      %p58 = scmp.ne.s32.totalorder %s47, %s48
      %p59 = scmp.eq.s32.totalorder %s25, 0
      %p60 = por %p58, %p59
      %p61 = scmp.ne.s32.totalorder %s47, %s48
      %p62 = scmp.eq.s32.totalorder %s26, 3
      %p63 = por %p61, %p62
      %p65 = scmp.ne.s32.totalorder %s48, %s64
      %p66 = scmp.eq.s32.totalorder %s26, 0
      %p67 = por %p65, %p66
      %s68 = ssub.s32 %s28, 1
      %p69 = scmp.gt.s32.totalorder %s68, 0
      %s70 = scalar_select %p69, %s68, 0
      %s71 = ssub.s32 %s35, 1
      %p72 = scmp.gt.s32.totalorder %s71, 0
      %s73 = scalar_select %p72, %s71, 0
      %s74 = ssub.s32 %s27, %s39
      %s75 = ssub.s32 %s70, %s73
      %s76 = sor.u32 %s74, %s75
      %p77 = scmp.eq.s32.totalorder %s76, 0
      %s79 = sadd.s32 %s78, 1
      %s80 = scalar_select %p77, %s78, %s79
      %p83 = pneg %p77
      %p84 = scmp.eq.s32.totalorder %s20, 3
      %p85 = por %p83, %p84
      %p86 = scmp.ne.s32.totalorder %s78, %s81
      %p87 = scmp.eq.s32.totalorder %s20, 0
      %p88 = por %p86, %p87
      %p89 = scmp.ne.s32.totalorder %s78, %s81
      %p90 = scmp.eq.s32.totalorder %s25, 3
      %p91 = por %p89, %p90
      %p92 = scmp.ne.s32.totalorder %s81, %s82
      %p93 = scmp.eq.s32.totalorder %s25, 0
      %p94 = por %p92, %p93
      %p95 = scmp.ne.s32.totalorder %s81, %s82
      %p96 = scmp.eq.s32.totalorder %s26, 3
      %p97 = por %p95, %p96
      %p99 = scmp.ne.s32.totalorder %s82, %s98
      %p100 = scmp.eq.s32.totalorder %s26, 0
      %p101 = por %p99, %p100
      %s102 = sadd.s32 %s28, 1
      %p103 = scmp.lt.s32.totalorder %s102, 1
      %s104 = scalar_select %p103, %s102, 1
      %s105 = sadd.s32 %s35, 1
      %p106 = scmp.lt.s32.totalorder %s105, 1
      %s107 = scalar_select %p106, %s105, 1
      %s108 = ssub.s32 %s27, %s39
      %s109 = ssub.s32 %s104, %s107
      %s110 = sor.u32 %s108, %s109
      %p111 = scmp.eq.s32.totalorder %s110, 0
      %s113 = sadd.s32 %s112, 1
      %s114 = scalar_select %p111, %s112, %s113
      %p117 = pneg %p111
      %p118 = scmp.eq.s32.totalorder %s20, 3
      %p119 = por %p117, %p118
      %p120 = scmp.ne.s32.totalorder %s112, %s115
      %p121 = scmp.eq.s32.totalorder %s20, 0
      %p122 = por %p120, %p121
      %p123 = scmp.ne.s32.totalorder %s112, %s115
      %p124 = scmp.eq.s32.totalorder %s25, 3
      %p125 = por %p123, %p124
      %p126 = scmp.ne.s32.totalorder %s115, %s116
      %p127 = scmp.eq.s32.totalorder %s25, 0
      %p128 = por %p126, %p127
      %p129 = scmp.ne.s32.totalorder %s115, %s116
      %p130 = scmp.eq.s32.totalorder %s26, 3
      %p131 = por %p129, %p130
      %p133 = scmp.ne.s32.totalorder %s116, %s132
      %p134 = scmp.eq.s32.totalorder %s26, 0
      %p135 = por %p133, %p134
      %s137 = sadd.s32 %s136, 1
      %p140 = scmp.eq.s32.totalorder %s20, 3
      %p141 = scmp.ne.s32.totalorder %s136, %s138
      %p142 = scmp.eq.s32.totalorder %s20, 0
      %p143 = por %p141, %p142
      %p144 = scmp.ne.s32.totalorder %s136, %s138
      %p145 = scmp.eq.s32.totalorder %s25, 3
      %p146 = por %p144, %p145
      %p147 = scmp.ne.s32.totalorder %s138, %s139
      %p148 = scmp.eq.s32.totalorder %s25, 0
      %p149 = por %p147, %p148
      %p150 = scmp.ne.s32.totalorder %s138, %s139
      %p151 = scmp.eq.s32.totalorder %s26, 3
      %p152 = por %p150, %p151
      %p154 = scmp.ne.s32.totalorder %s139, %s153
      %p155 = scmp.eq.s32.totalorder %s26, 0
      %p156 = por %p154, %p155
      %s158 = sadd.s32 %s157, 1
      %p161 = scmp.eq.s32.totalorder %s20, 3
      %p162 = scmp.ne.s32.totalorder %s157, %s159
      %p163 = scmp.eq.s32.totalorder %s20, 0
      %p164 = por %p162, %p163
      %p165 = scmp.ne.s32.totalorder %s157, %s159
      %p166 = scmp.eq.s32.totalorder %s25, 3
      %p167 = por %p165, %p166
      %p168 = scmp.ne.s32.totalorder %s159, %s160
      %p169 = scmp.eq.s32.totalorder %s25, 0
      %p170 = por %p168, %p169
      %p171 = scmp.ne.s32.totalorder %s159, %s160
      %p172 = scmp.eq.s32.totalorder %s26, 3
      %p173 = por %p171, %p172
      %p175 = scmp.ne.s32.totalorder %s160, %s174
      %p176 = scmp.eq.s32.totalorder %s26, 0
      %p177 = por %p175, %p176
      %s179 = sadd.s32 %s178, 1
      %p182 = scmp.eq.s32.totalorder %s20, 3
      %p183 = scmp.ne.s32.totalorder %s178, %s180
      %p184 = scmp.eq.s32.totalorder %s20, 0
      %p185 = por %p183, %p184
      %p186 = scmp.ne.s32.totalorder %s178, %s180
      %p187 = scmp.eq.s32.totalorder %s25, 3
      %p188 = por %p186, %p187
      %p189 = scmp.ne.s32.totalorder %s180, %s181
      %p190 = scmp.eq.s32.totalorder %s25, 0
      %p191 = por %p189, %p190
      %p192 = scmp.ne.s32.totalorder %s180, %s181
      %p193 = scmp.eq.s32.totalorder %s26, 3
      %p194 = por %p192, %p193
      %p196 = scmp.ne.s32.totalorder %s181, %s195
      %p197 = scmp.eq.s32.totalorder %s26, 0
      %p198 = por %p196, %p197
      %s200 = sadd.s32 %s199, 1
      %p203 = scmp.eq.s32.totalorder %s20, 3
      %p204 = scmp.ne.s32.totalorder %s199, %s201
      %p205 = scmp.eq.s32.totalorder %s20, 0
      %p206 = por %p204, %p205
      %p207 = scmp.ne.s32.totalorder %s199, %s201
      %p208 = scmp.eq.s32.totalorder %s25, 3
      %p209 = por %p207, %p208
      %p210 = scmp.ne.s32.totalorder %s201, %s202
      %p211 = scmp.eq.s32.totalorder %s25, 0
      %p212 = por %p210, %p211
      %p213 = scmp.ne.s32.totalorder %s201, %s202
      %p214 = scmp.eq.s32.totalorder %s26, 3
      %p215 = por %p213, %p214
      %p217 = scmp.ne.s32.totalorder %s202, %s216
      %p218 = scmp.eq.s32.totalorder %s26, 0
      %p219 = por %p217, %p218
      %s221 = sadd.s32 %s220, 1
      %p224 = scmp.eq.s32.totalorder %s20, 3
      %p225 = scmp.ne.s32.totalorder %s220, %s222
      %p226 = scmp.eq.s32.totalorder %s20, 0
      %p227 = por %p225, %p226
      %p228 = scmp.ne.s32.totalorder %s220, %s222
      %p229 = scmp.eq.s32.totalorder %s25, 3
      %p230 = por %p228, %p229
      %p231 = scmp.ne.s32.totalorder %s222, %s223
      %p232 = scmp.eq.s32.totalorder %s25, 0
      %p233 = por %p231, %p232
      %p234 = scmp.ne.s32.totalorder %s222, %s223
      %p235 = scmp.eq.s32.totalorder %s26, 3
      %p236 = por %p234, %p235
      %p238 = scmp.ne.s32.totalorder %s223, %s237
      %p239 = scmp.eq.s32.totalorder %s26, 0
      %p240 = por %p238, %p239
      %s242 = sadd.s32 %s241, 1
      %p245 = scmp.eq.s32.totalorder %s20, 3
      %p246 = scmp.ne.s32.totalorder %s241, %s243
      %p247 = scmp.eq.s32.totalorder %s20, 0
      %p248 = por %p246, %p247
      %p249 = scmp.ne.s32.totalorder %s241, %s243
      %p250 = scmp.eq.s32.totalorder %s25, 3
      %p251 = por %p249, %p250
      %p252 = scmp.ne.s32.totalorder %s243, %s244
      %p253 = scmp.eq.s32.totalorder %s25, 0
      %p254 = por %p252, %p253
      %p255 = scmp.ne.s32.totalorder %s243, %s244
      %p256 = scmp.eq.s32.totalorder %s26, 3
      %p257 = por %p255, %p256
      %p259 = scmp.ne.s32.totalorder %s244, %s258
      %p260 = scmp.eq.s32.totalorder %s26, 0
      %p261 = por %p259, %p260
      %s263 = sadd.s32 %s262, 1
      %p266 = scmp.eq.s32.totalorder %s20, 3
      %p267 = scmp.ne.s32.totalorder %s262, %s264
      %p268 = scmp.eq.s32.totalorder %s20, 0
      %p269 = por %p267, %p268
      %p270 = scmp.ne.s32.totalorder %s262, %s264
      %p271 = scmp.eq.s32.totalorder %s25, 3
      %p272 = por %p270, %p271
      %p273 = scmp.ne.s32.totalorder %s264, %s265
      %p274 = scmp.eq.s32.totalorder %s25, 0
      %p275 = por %p273, %p274
      %p276 = scmp.ne.s32.totalorder %s264, %s265
      %p277 = scmp.eq.s32.totalorder %s26, 3
      %p278 = por %p276, %p277
      %p280 = scmp.ne.s32.totalorder %s265, %s279
      %p281 = scmp.eq.s32.totalorder %s26, 0
      %p282 = por %p280, %p281
      %s284 = sadd.s32 %s283, 1
      %p287 = scmp.eq.s32.totalorder %s20, 3
      %p288 = scmp.ne.s32.totalorder %s283, %s285
      %p289 = scmp.eq.s32.totalorder %s20, 0
      %p290 = por %p288, %p289
      %p291 = scmp.ne.s32.totalorder %s283, %s285
      %p292 = scmp.eq.s32.totalorder %s25, 3
      %p293 = por %p291, %p292
      %p294 = scmp.ne.s32.totalorder %s285, %s286
      %p295 = scmp.eq.s32.totalorder %s25, 0
      %p296 = por %p294, %p295
      %p297 = scmp.ne.s32.totalorder %s285, %s286
      %p298 = scmp.eq.s32.totalorder %s26, 3
      %p299 = por %p297, %p298
      %p301 = scmp.ne.s32.totalorder %s286, %s300
      %p302 = scmp.eq.s32.totalorder %s26, 0
      %p303 = por %p301, %p302
      %s304 = ssub.s32 %s27, %s39
      %s305 = ssub.s32 %s28, %s35
      %s306 = sor.u32 %s304, %s305
      %p307 = scmp.eq.s32.totalorder %s306, 0
      %s309 = sadd.s32 %s308, 1
      %s310 = scalar_select %p307, %s308, %s309
      %p313 = pneg %p307
      %p314 = scmp.eq.s32.totalorder %s20, 3
      %p315 = por %p313, %p314
      %p316 = scmp.ne.s32.totalorder %s308, %s311
      %p317 = scmp.eq.s32.totalorder %s20, 0
      %p318 = por %p316, %p317
      %p319 = scmp.ne.s32.totalorder %s308, %s311
      %p320 = scmp.eq.s32.totalorder %s25, 3
      %p321 = por %p319, %p320
      %p322 = scmp.ne.s32.totalorder %s311, %s312
      %p323 = scmp.eq.s32.totalorder %s25, 0
      %p324 = por %p322, %p323
      %p325 = scmp.ne.s32.totalorder %s311, %s312
      %p326 = scmp.eq.s32.totalorder %s26, 3
      %p327 = por %p325, %p326
      %p329 = scmp.ne.s32.totalorder %s312, %s328
      %p330 = scmp.eq.s32.totalorder %s26, 0
      %p331 = por %p329, %p330
      %p332 = scmp.le.s32.totalorder 1, %s20
      %p333 = scmp.lt.s32.totalorder %s20, 5
      %p334 = pnand %p332, %p333
      %p335 = pneg %p334
      // Predicated region
      $region9: #{tpu_custom_call.1} parent=5 // pred_check
        _
      $region10: #{tpu_custom_call.1} parent=5 // pred_check_branch
        %337 = sbr.rel (%p334) target = $region12
      $region11: #{tpu_custom_call.1} parent=5 // pred_region
        %s338 = ssub.s32 %s20, 1
        // Predicated region
        $region13: #{tpu_custom_call.1} parent=11 // pred_check
          %p339 = pneg %p149
        $region14: #{tpu_custom_call.1} parent=11 // pred_check_branch
          %341 = sbr.rel (%p339) target = $region16
        $region15: #{tpu_custom_call.1} parent=11 // pred_region
          _
        $region16: #{tpu_custom_call.1} parent=11 // pred_fallthru
          _
        // Predicated region
        $region17: #{tpu_custom_call.1} parent=11 // pred_check
          %p342 = pneg %p170
        $region18: #{tpu_custom_call.1} parent=11 // pred_check_branch
          %344 = sbr.rel (%p342) target = $region20
        $region19: #{tpu_custom_call.1} parent=11 // pred_region
          _
        $region20: #{tpu_custom_call.1} parent=11 // pred_fallthru
          _
        // Predicated region
        $region21: #{tpu_custom_call.1} parent=11 // pred_check
          %p345 = pneg %p191
        $region22: #{tpu_custom_call.1} parent=11 // pred_check_branch
          %347 = sbr.rel (%p345) target = $region24
        $region23: #{tpu_custom_call.1} parent=11 // pred_region
          _
        $region24: #{tpu_custom_call.1} parent=11 // pred_fallthru
          _
        // Predicated region
        $region25: #{tpu_custom_call.1} parent=11 // pred_check
          %p348 = pneg %p212
        $region26: #{tpu_custom_call.1} parent=11 // pred_check_branch
          %350 = sbr.rel (%p348) target = $region28
        $region27: #{tpu_custom_call.1} parent=11 // pred_region
          _
        $region28: #{tpu_custom_call.1} parent=11 // pred_fallthru
          _
        // Predicated region
        $region29: #{tpu_custom_call.1} parent=11 // pred_check
          %p351 = pneg %p233
        $region30: #{tpu_custom_call.1} parent=11 // pred_check_branch
          %353 = sbr.rel (%p351) target = $region32
        $region31: #{tpu_custom_call.1} parent=11 // pred_region
          _
        $region32: #{tpu_custom_call.1} parent=11 // pred_fallthru
          _
        // Predicated region
        $region33: #{tpu_custom_call.1} parent=11 // pred_check
          %p354 = pneg %p254
        $region34: #{tpu_custom_call.1} parent=11 // pred_check_branch
          %356 = sbr.rel (%p354) target = $region36
        $region35: #{tpu_custom_call.1} parent=11 // pred_region
          _
        $region36: #{tpu_custom_call.1} parent=11 // pred_fallthru
          _
        // Predicated region
        $region37: #{tpu_custom_call.1} parent=11 // pred_check
          %p357 = pneg %p275
        $region38: #{tpu_custom_call.1} parent=11 // pred_check_branch
          %359 = sbr.rel (%p357) target = $region40
        $region39: #{tpu_custom_call.1} parent=11 // pred_region
          _
        $region40: #{tpu_custom_call.1} parent=11 // pred_fallthru
          _
        // Predicated region
        $region41: #{tpu_custom_call.1} parent=11 // pred_check
          %p360 = pneg %p296
        $region42: #{tpu_custom_call.1} parent=11 // pred_check_branch
          %362 = sbr.rel (%p360) target = $region44
        $region43: #{tpu_custom_call.1} parent=11 // pred_region
          _
        $region44: #{tpu_custom_call.1} parent=11 // pred_fallthru
          _
      $region12: #{tpu_custom_call.1} parent=5 // pred_fallthru
        _
      %p363 = scmp.lt.s32.totalorder %s20, 4
      // Predicated region
      $region45: #{tpu_custom_call.1} parent=5 // pred_check
        %p364 = pneg %p363
      $region46: #{tpu_custom_call.1} parent=5 // pred_check_branch
        %366 = sbr.rel (%p364) target = $region48
      $region47: #{tpu_custom_call.1} parent=5 // pred_region
        // Predicated region
        $region49: #{tpu_custom_call.1} parent=47 // pred_check
          %p367 = pneg %p54
        $region50: #{tpu_custom_call.1} parent=47 // pred_check_branch
          %369 = sbr.rel (%p367) target = $region52
        $region51: #{tpu_custom_call.1} parent=47 // pred_region
          %p370 = scmp.lt.s32.totalorder %s27, 1
          %s371 = scalar_select %p370, %s27, 1
          %p372 = scmp.lt.s32.totalorder %s28, 1
          %s373 = scalar_select %p372, %s28, 1
          %s374 = smul.addr %s371, 2
          %s375 = sadd.s32 %s373, %s374
          %s376 = smul.addr %s375, 4
          %s377 = scalar_lea.vmem %s0, %s376
        $region52: #{tpu_custom_call.1} parent=47 // pred_fallthru
          _
        // Predicated region
        $region53: #{tpu_custom_call.1} parent=47 // pred_check
          %p378 = pneg %p88
        $region54: #{tpu_custom_call.1} parent=47 // pred_check_branch
          %380 = sbr.rel (%p378) target = $region56
        $region55: #{tpu_custom_call.1} parent=47 // pred_region
          %s381 = ssub.s32 %s28, 1
          %p382 = scmp.gt.s32.totalorder %s381, 0
          %s383 = scalar_select %p382, %s381, 0
          %p384 = scmp.lt.s32.totalorder %s27, 1
          %s385 = scalar_select %p384, %s27, 1
          %p386 = scmp.lt.s32.totalorder %s383, 1
          %s387 = scalar_select %p386, %s383, 1
          %s388 = smul.addr %s385, 2
          %s389 = sadd.s32 %s387, %s388
          %s390 = smul.addr %s389, 4
          %s391 = scalar_lea.vmem %s1, %s390
          %s392 = ssub.s32 %s28, 1
          %p393 = scmp.gt.s32.totalorder %s392, 0
          %s394 = scalar_select %p393, %s392, 0
        $region56: #{tpu_custom_call.1} parent=47 // pred_fallthru
          _
        // Predicated region
        $region57: #{tpu_custom_call.1} parent=47 // pred_check
          %p395 = pneg %p122
        $region58: #{tpu_custom_call.1} parent=47 // pred_check_branch
          %397 = sbr.rel (%p395) target = $region60
        $region59: #{tpu_custom_call.1} parent=47 // pred_region
          %s398 = sadd.s32 %s28, 1
          %p399 = scmp.lt.s32.totalorder %s398, 1
          %s400 = scalar_select %p399, %s398, 1
          %p401 = scmp.lt.s32.totalorder %s27, 1
          %s402 = scalar_select %p401, %s27, 1
          %p403 = scmp.lt.s32.totalorder %s400, 1
          %s404 = scalar_select %p403, %s400, 1
          %s405 = smul.addr %s402, 2
          %s406 = sadd.s32 %s404, %s405
          %s407 = smul.addr %s406, 4
          %s408 = scalar_lea.vmem %s2, %s407
          %s409 = sadd.s32 %s28, 1
          %p410 = scmp.lt.s32.totalorder %s409, 1
          %s411 = scalar_select %p410, %s409, 1
        $region60: #{tpu_custom_call.1} parent=47 // pred_fallthru
          _
      $region48: #{tpu_custom_call.1} parent=5 // pred_fallthru
        _
      %p412 = scmp.le.s32.totalorder 1, %s20
      %p413 = scmp.lt.s32.totalorder %s20, 5
      %p414 = pnand %p412, %p413
      %p415 = pneg %p414
      // Predicated region
      $region61: #{tpu_custom_call.1} parent=5 // pred_check
        _
      $region62: #{tpu_custom_call.1} parent=5 // pred_check_branch
        %417 = sbr.rel (%p414) target = $region64
      $region63: #{tpu_custom_call.1} parent=5 // pred_region
        %s418 = ssub.s32 %s20, 1
        %p419 = scmp.lt.s32.totalorder %s29, 1
        %s420 = scalar_select %p419, %s29, 1
        %p421 = scmp.lt.s32.totalorder %s30, 1
        %s422 = scalar_select %p421, %s30, 1
        %s423 = smul.addr %s420, 2
        %s424 = sadd.s32 %s422, %s423
        %s425 = smul.addr %s424, 4
        %s426 = scalar_lea.vmem %s0, %s425
        %p427 = pneg %p60
        %p428 = pneg %p57
        %s429 = ssub.s32 %s30, 1
        %p430 = scmp.gt.s32.totalorder %s429, 0
        %s431 = scalar_select %p430, %s429, 0
        %p432 = scmp.lt.s32.totalorder %s29, 1
        %s433 = scalar_select %p432, %s29, 1
        %p434 = scmp.lt.s32.totalorder %s431, 1
        %s435 = scalar_select %p434, %s431, 1
        %s436 = smul.addr %s433, 2
        %s437 = sadd.s32 %s435, %s436
        %s438 = smul.addr %s437, 4
        %s439 = scalar_lea.vmem %s1, %s438
        %p440 = pneg %p94
        %p441 = pneg %p91
        %s442 = sadd.s32 %s30, 1
        %p443 = scmp.lt.s32.totalorder %s442, 1
        %s444 = scalar_select %p443, %s442, 1
        %p445 = scmp.lt.s32.totalorder %s29, 1
        %s446 = scalar_select %p445, %s29, 1
        %p447 = scmp.lt.s32.totalorder %s444, 1
        %s448 = scalar_select %p447, %s444, 1
        %s449 = smul.addr %s446, 2
        %s450 = sadd.s32 %s448, %s449
        %s451 = smul.addr %s450, 4
        %s452 = scalar_lea.vmem %s2, %s451
        %p453 = pneg %p128
        %p454 = pneg %p125
        %p455 = pneg %p149
        %p456 = pneg %p146
        %p457 = pneg %p170
        %p458 = pneg %p167
        %p459 = pneg %p191
        %p460 = pneg %p188
        %p461 = pneg %p212
        %p462 = pneg %p209
        %p463 = pneg %p233
        %p464 = pneg %p230
        %p465 = pneg %p254
        %p466 = pneg %p251
        %p467 = pneg %p275
        %p468 = pneg %p272
        %p469 = pneg %p296
        %p470 = pneg %p293
        %p471 = pneg %p324
        %p472 = pneg %p321
        %s473 = sand.u32 %s311, 1
        %s474 = scalar_lea.sflag [#allocation3], %s473
        %s475 = sand.u32 %s311, 1
        %s476 = smul.addr %s475, 4
        %s477 = scalar_lea.vmem [#allocation2], %s476
        %p478 = scmp.lt.s32.totalorder %s29, 1
        %s479 = scalar_select %p478, %s29, 1
        %p480 = scmp.lt.s32.totalorder %s30, 1
        %s481 = scalar_select %p480, %s30, 1
        %s482 = smul.addr %s479, 2
        %s483 = sadd.s32 %s481, %s482
        %s484 = smul.addr %s483, 4
        %s485 = scalar_lea.vmem %s0, %s484
        %s486 = ssub.s32 %s30, 1
        %p487 = scmp.gt.s32.totalorder %s486, 0
        %s488 = scalar_select %p487, %s486, 0
        %p489 = scmp.lt.s32.totalorder %s29, 1
        %s490 = scalar_select %p489, %s29, 1
        %p491 = scmp.lt.s32.totalorder %s488, 1
        %s492 = scalar_select %p491, %s488, 1
        %s493 = smul.addr %s490, 2
        %s494 = sadd.s32 %s492, %s493
        %s495 = smul.addr %s494, 4
        %s496 = scalar_lea.vmem %s1, %s495
        %s497 = ssub.s32 %s30, 1
        %p498 = scmp.gt.s32.totalorder %s497, 0
        %s499 = scalar_select %p498, %s497, 0
        %s500 = sadd.s32 %s30, 1
        %p501 = scmp.lt.s32.totalorder %s500, 1
        %s502 = scalar_select %p501, %s500, 1
        %p503 = scmp.lt.s32.totalorder %s29, 1
        %s504 = scalar_select %p503, %s29, 1
        %p505 = scmp.lt.s32.totalorder %s502, 1
        %s506 = scalar_select %p505, %s502, 1
        %s507 = smul.addr %s504, 2
        %s508 = sadd.s32 %s506, %s507
        %s509 = smul.addr %s508, 4
        %s510 = scalar_lea.vmem %s2, %s509
        %s511 = sadd.s32 %s30, 1
        %p512 = scmp.lt.s32.totalorder %s511, 1
        %s513 = scalar_select %p512, %s511, 1
        %v514 = vld [vmem:[%s3] sm:$0xf]
        %v515 = vld [vmem:[%s4] sm:$0xf]
        %v516 = vld [vmem:[%s5] sm:$0xff]
        %v517 = vld [vmem:[%s5 + $0x8] sm:$0xff]
        %v518 = vld [vmem:[%s6] sm:$0xff]
        %v519 = vld [vmem:[%s6 + $0x8] sm:$0xff]
        %v520 = vld [vmem:[%s485] sm:$0xf]
        %vm521 = vcmask 1043456
        %v522 = vsel %vm521, %v520, 0.0
        %v523 = vrot.slane %v522, 4
        %v524 = vadd.f32 %v522, %v523
        %v525 = vrot.slane %v524, 2
        %v526 = vadd.f32 %v524, %v525
        %v527 = vrot.slane %v526, 1
        %v528 = vadd.f32 %v526, %v527
        %v529 = vrcp.pop 4.0
        %v530 = vmul.f32 %v528, %v529
        %v531 = vsub.f32 %v520, %v530
        %v532 = vmul.f32 %v531, %v531
        %v533 = vsel %vm521, %v532, 0.0
        %v534 = vrot.slane %v533, 4
        %v535 = vadd.f32 %v533, %v534
        %v536 = vrot.slane %v535, 2
        %v537 = vadd.f32 %v535, %v536
        %v538 = vrot.slane %v537, 1
        %v539 = vadd.f32 %v537, %v538
        %v540 = vmul.f32 %v539, %v529
        %v541 = vadd.f32 %v540, 1e-06
        %v542 = vrsqrt.pop %v541
        %v543 = vmul.f32 %v531, %v542
        %545 = vset.pattern.permute.xlu0 0
        %546 = vperm.xlu0 %545, %v514
        %v547 = vpop.permute.xlu0 %546
        %v549 = vmul.f32 %v543, %v547
        %551 = vset.pattern.permute.xlu0 0
        %552 = vperm.xlu0 %551, %v515
        %v553 = vpop.permute.xlu0 %552
        %v555 = vadd.f32 %v549, %v553
        %557 = vset.pattern.permute.xlu0 0
        %558 = vperm.xlu0 %557, %v516
        %v559 = vpop.permute.xlu0 %558
        %562 = vset.pattern.permute.xlu0 0
        %563 = vperm.xlu0 %562, %v517
        %v564 = vpop.permute.xlu0 %563
        %v566 = vlaneseq
        %v567 = vshrl.u32 %v566, 7
        %v568 = vsub.s32 0, %v567
        %v569 = vrot.slane %v555, %v568
        %v570 = vmul.f32 %v559, %v569
        %v571 = vmul.f32 %v564, %v569
        %572 = vset.pattern.permute.xlu0 1
        %573 = vperm.xlu0 %572, %v516
        %v574 = vpop.permute.xlu0 %573
        %576 = vset.pattern.permute.xlu0 1
        %577 = vperm.xlu0 %576, %v517
        %v578 = vpop.permute.xlu0 %577
        %v580 = vlaneseq
        %v581 = vshrl.u32 %v580, 7
        %v582 = vsub.s32 1, %v581
        %v583 = vrot.slane %v555, %v582
        %v584 = vmul.f32 %v574, %v583
        %v585 = vmul.f32 %v578, %v583
        %v586 = vadd.f32 %v570, %v584
        %v587 = vadd.f32 %v571, %v585
        %588 = vset.pattern.permute.xlu0 2
        %589 = vperm.xlu0 %588, %v516
        %v590 = vpop.permute.xlu0 %589
        %592 = vset.pattern.permute.xlu0 2
        %593 = vperm.xlu0 %592, %v517
        %v594 = vpop.permute.xlu0 %593
        %v596 = vlaneseq
        %v597 = vshrl.u32 %v596, 7
        %v598 = vsub.s32 2, %v597
        %v599 = vrot.slane %v555, %v598
        %v600 = vmul.f32 %v590, %v599
        %v601 = vmul.f32 %v594, %v599
        %v602 = vadd.f32 %v586, %v600
        %v603 = vadd.f32 %v587, %v601
        %604 = vset.pattern.permute.xlu0 3
        %605 = vperm.xlu0 %604, %v516
        %v606 = vpop.permute.xlu0 %605
        %608 = vset.pattern.permute.xlu0 3
        %609 = vperm.xlu0 %608, %v517
        %v610 = vpop.permute.xlu0 %609
        %v612 = vlaneseq
        %v613 = vshrl.u32 %v612, 7
        %v614 = vsub.s32 3, %v613
        %v615 = vrot.slane %v555, %v614
        %v616 = vmul.f32 %v606, %v615
        %v617 = vmul.f32 %v610, %v615
        %v618 = vadd.f32 %v602, %v616
        %v619 = vadd.f32 %v603, %v617
        %621 = vset.pattern.permute.xlu0 0
        %622 = vperm.xlu0 %621, %v518
        %v623 = vpop.permute.xlu0 %622
        %626 = vset.pattern.permute.xlu0 0
        %627 = vperm.xlu0 %626, %v519
        %v628 = vpop.permute.xlu0 %627
        %v630 = vadd.f32 %v618, %v623
        %v631 = vadd.f32 %v619, %v628
        %v632 = vmul.f32 %v630, 0.70710677
        %v633 = vmul.f32 %v631, 0.70710677
        %v634 = vand.u32 2147483647, %v632
        %v635 = vand.u32 2147483647, %v633
        %v636 = vmul.f32 %v634, 0.3275911
        %v637 = vmul.f32 %v635, 0.3275911
        %v638 = vadd.f32 %v636, 1.0
        %v639 = vadd.f32 %v637, 1.0
        %v640 = vrcp.pop %v638
        %v641 = vrcp.pop %v639
        %v642 = vmul.f32 %v638, %v640
        %v643 = vmul.f32 %v639, %v641
        %v644 = vsub.f32 2.0, %v642
        %v645 = vsub.f32 2.0, %v643
        %v646 = vmul.f32 %v640, %v644
        %v647 = vmul.f32 %v641, %v645
        %v648 = vmul.f32 %v646, 1.0614054
        %v649 = vmul.f32 %v647, 1.0614054
        %v650 = vadd.f32 %v648, -1.4531521
        %v651 = vadd.f32 %v649, -1.4531521
        %v652 = vmul.f32 %v650, %v646
        %v653 = vmul.f32 %v651, %v647
        %v654 = vadd.f32 %v652, 1.4214138
        %v655 = vadd.f32 %v653, 1.4214138
        %v656 = vmul.f32 %v654, %v646
        %v657 = vmul.f32 %v655, %v647
        %v658 = vadd.f32 %v656, -0.28449672
        %v659 = vadd.f32 %v657, -0.28449672
        %v660 = vmul.f32 %v658, %v646
        %v661 = vmul.f32 %v659, %v647
        %v662 = vadd.f32 %v660, 0.2548296
        %v663 = vadd.f32 %v661, 0.2548296
        %v664 = vmul.f32 %v662, %v646
        %v665 = vmul.f32 %v663, %v647
        %v666 = vsub.f32 0.0, %v634
        %v667 = vsub.f32 0.0, %v635
        %v668 = vmul.f32 %v666, %v634
        %v669 = vmul.f32 %v667, %v635
        %v670 = vmul.f32 %v668, 1.442695
        %v671 = vpow.pop %v670
        %v672 = vmul.f32 %v669, 1.442695
        %v673 = vpow.pop %v672
        %v674 = vmul.f32 %v664, %v671
        %v675 = vmul.f32 %v665, %v673
        %v676 = vmax.f32 %v630, 0.0
        %v677 = vmax.f32 %v631, 0.0
        %v678 = vmul.f32 %v634, 0.70710677
        %v679 = vmul.f32 %v635, 0.70710677
        %v680 = vmul.f32 %v678, %v674
        %v681 = vmul.f32 %v679, %v675
        %v682 = vsub.f32 %v676, %v680
        %v683 = vsub.f32 %v677, %v681
        %v684 = vld [vmem:[%s496] sm:$0xf]
        %v685 = vld [vmem:[%s510] sm:$0xf]
        %p686 = scmp.gt.s32.totalorder %s30, 0
        %vm687 = vcmask 1044352
        %v688 = vsel %vm687, %v684, 0.0
        %v689 = vrot.slane %v688, 4
        %v690 = vadd.f32 %v688, %v689
        %v691 = vrot.slane %v690, 2
        %v692 = vadd.f32 %v690, %v691
        %v693 = vrot.slane %v692, 1
        %v694 = vadd.f32 %v692, %v693
        %v695 = vmul.f32 %v694, %v529
        %v696 = vsub.f32 %v684, %v695
        %v697 = vmul.f32 %v696, %v696
        %v698 = vsel %vm687, %v697, 0.0
        %v699 = vrot.slane %v698, 4
        %v700 = vadd.f32 %v698, %v699
        %v701 = vrot.slane %v700, 2
        %v702 = vadd.f32 %v700, %v701
        %v703 = vrot.slane %v702, 1
        %v704 = vadd.f32 %v702, %v703
        %v705 = vmul.f32 %v704, %v529
        %v706 = vadd.f32 %v705, 1e-06
        %v707 = vrsqrt.pop %v706
        %v708 = vmul.f32 %v696, %v707
        %v709 = vmul.f32 %v708, %v547
        %v710 = vadd.f32 %v709, %v553
        %v711 = vlaneseq
        %v712 = vshrl.u32 %v711, 7
        %v713 = vsub.s32 0, %v712
        %v714 = vrot.slane %v710, %v713
        %v715 = vmul.f32 %v559, %v714
        %v716 = vmul.f32 %v564, %v714
        %v717 = vlaneseq
        %v718 = vshrl.u32 %v717, 7
        %v719 = vsub.s32 1, %v718
        %v720 = vrot.slane %v710, %v719
        %v721 = vmul.f32 %v574, %v720
        %v722 = vmul.f32 %v578, %v720
        %v723 = vadd.f32 %v715, %v721
        %v724 = vadd.f32 %v716, %v722
        %v725 = vlaneseq
        %v726 = vshrl.u32 %v725, 7
        %v727 = vsub.s32 2, %v726
        %v728 = vrot.slane %v710, %v727
        %v729 = vmul.f32 %v590, %v728
        %v730 = vmul.f32 %v594, %v728
        %v731 = vadd.f32 %v723, %v729
        %v732 = vadd.f32 %v724, %v730
        %v733 = vlaneseq
        %v734 = vshrl.u32 %v733, 7
        %v735 = vsub.s32 3, %v734
        %v736 = vrot.slane %v710, %v735
        %v737 = vmul.f32 %v606, %v736
        %v738 = vmul.f32 %v610, %v736
        %v739 = vadd.f32 %v731, %v737
        %v740 = vadd.f32 %v732, %v738
        %v741 = vadd.f32 %v739, %v623
        %v742 = vadd.f32 %v740, %v628
        %v743 = vmul.f32 %v741, 0.70710677
        %v744 = vmul.f32 %v742, 0.70710677
        %v745 = vand.u32 2147483647, %v743
        %v746 = vand.u32 2147483647, %v744
        %v747 = vmul.f32 %v745, 0.3275911
        %v748 = vmul.f32 %v746, 0.3275911
        %v749 = vadd.f32 %v747, 1.0
        %v750 = vadd.f32 %v748, 1.0
        %v751 = vrcp.pop %v749
        %v752 = vrcp.pop %v750
        %v753 = vmul.f32 %v749, %v751
        %v754 = vmul.f32 %v750, %v752
        %v755 = vsub.f32 2.0, %v753
        %v756 = vsub.f32 2.0, %v754
        %v757 = vmul.f32 %v751, %v755
        %v758 = vmul.f32 %v752, %v756
        %v759 = vmul.f32 %v757, 1.0614054
        %v760 = vmul.f32 %v758, 1.0614054
        %v761 = vadd.f32 %v759, -1.4531521
        %v762 = vadd.f32 %v760, -1.4531521
        %v763 = vmul.f32 %v761, %v757
        %v764 = vmul.f32 %v762, %v758
        %v765 = vadd.f32 %v763, 1.4214138
        %v766 = vadd.f32 %v764, 1.4214138
        %v767 = vmul.f32 %v765, %v757
        %v768 = vmul.f32 %v766, %v758
        %v769 = vadd.f32 %v767, -0.28449672
        %v770 = vadd.f32 %v768, -0.28449672
        %v771 = vmul.f32 %v769, %v757
        %v772 = vmul.f32 %v770, %v758
        %v773 = vadd.f32 %v771, 0.2548296
        %v774 = vadd.f32 %v772, 0.2548296
        %v775 = vmul.f32 %v773, %v757
        %v776 = vmul.f32 %v774, %v758
        %v777 = vsub.f32 0.0, %v745
        %v778 = vsub.f32 0.0, %v746
        %v779 = vmul.f32 %v777, %v745
        %v780 = vmul.f32 %v778, %v746
        %v781 = vmul.f32 %v779, 1.442695
        %v782 = vpow.pop %v781
        %v783 = vmul.f32 %v780, 1.442695
        %v784 = vpow.pop %v783
        %v785 = vmul.f32 %v775, %v782
        %v786 = vmul.f32 %v776, %v784
        %v787 = vmax.f32 %v741, 0.0
        %v788 = vmax.f32 %v742, 0.0
        %v789 = vmul.f32 %v745, 0.70710677
        %v790 = vmul.f32 %v746, 0.70710677
        %v791 = vmul.f32 %v789, %v785
        %v792 = vmul.f32 %v790, %v786
        %v793 = vsub.f32 %v787, %v791
        %v794 = vsub.f32 %v788, %v792
        %s795 = scalar_select %p686, 1, 0
        %v796 = vstv %s795
        %vm797 = vcmp.eq.s32.totalorder %v796, 1
        %v798 = vsel %vm797, %v793, 0.0
        %v799 = vsel %vm797, %v794, 0.0
        %p800 = scmp.lt.s32.totalorder %s30, 1
        %vm801 = vcmask 125952
        %v802 = vsel %vm801, %v685, 0.0
        %v803 = vrot.slane %v802, 4
        %v804 = vadd.f32 %v802, %v803
        %v805 = vrot.slane %v804, 2
        %v806 = vadd.f32 %v804, %v805
        %v807 = vrot.slane %v806, 1
        %v808 = vadd.f32 %v806, %v807
        %v809 = vmul.f32 %v808, %v529
        %v810 = vsub.f32 %v685, %v809
        %v811 = vmul.f32 %v810, %v810
        %v812 = vsel %vm801, %v811, 0.0
        %v813 = vrot.slane %v812, 4
        %v814 = vadd.f32 %v812, %v813
        %v815 = vrot.slane %v814, 2
        %v816 = vadd.f32 %v814, %v815
        %v817 = vrot.slane %v816, 1
        %v818 = vadd.f32 %v816, %v817
        %v819 = vmul.f32 %v818, %v529
        %v820 = vadd.f32 %v819, 1e-06
        %v821 = vrsqrt.pop %v820
        %v822 = vmul.f32 %v810, %v821
        %v823 = vmul.f32 %v822, %v547
        %v824 = vadd.f32 %v823, %v553
        %v825 = vlaneseq
        %v826 = vshrl.u32 %v825, 7
        %v827 = vsub.s32 0, %v826
        %v828 = vrot.slane %v824, %v827
        %v829 = vmul.f32 %v559, %v828
        %v830 = vmul.f32 %v564, %v828
        %v831 = vlaneseq
        %v832 = vshrl.u32 %v831, 7
        %v833 = vsub.s32 1, %v832
        %v834 = vrot.slane %v824, %v833
        %v835 = vmul.f32 %v574, %v834
        %v836 = vmul.f32 %v578, %v834
        %v837 = vadd.f32 %v829, %v835
        %v838 = vadd.f32 %v830, %v836
        %v839 = vlaneseq
        %v840 = vshrl.u32 %v839, 7
        %v841 = vsub.s32 2, %v840
        %v842 = vrot.slane %v824, %v841
        %v843 = vmul.f32 %v590, %v842
        %v844 = vmul.f32 %v594, %v842
        %v845 = vadd.f32 %v837, %v843
        %v846 = vadd.f32 %v838, %v844
        %v847 = vlaneseq
        %v848 = vshrl.u32 %v847, 7
        %v849 = vsub.s32 3, %v848
        %v850 = vrot.slane %v824, %v849
        %v851 = vmul.f32 %v606, %v850
        %v852 = vmul.f32 %v610, %v850
        %v853 = vadd.f32 %v845, %v851
        %v854 = vadd.f32 %v846, %v852
        %v855 = vadd.f32 %v853, %v623
        %v856 = vadd.f32 %v854, %v628
        %v857 = vmul.f32 %v855, 0.70710677
        %v858 = vmul.f32 %v856, 0.70710677
        %v859 = vand.u32 2147483647, %v857
        %v860 = vand.u32 2147483647, %v858
        %v861 = vmul.f32 %v859, 0.3275911
        %v862 = vmul.f32 %v860, 0.3275911
        %v863 = vadd.f32 %v861, 1.0
        %v864 = vadd.f32 %v862, 1.0
        %v865 = vrcp.pop %v863
        %v866 = vrcp.pop %v864
        %v867 = vmul.f32 %v863, %v865
        %v868 = vmul.f32 %v864, %v866
        %v869 = vsub.f32 2.0, %v867
        %v870 = vsub.f32 2.0, %v868
        %v871 = vmul.f32 %v865, %v869
        %v872 = vmul.f32 %v866, %v870
        %v873 = vmul.f32 %v871, 1.0614054
        %v874 = vmul.f32 %v872, 1.0614054
        %v875 = vadd.f32 %v873, -1.4531521
        %v876 = vadd.f32 %v874, -1.4531521
        %v877 = vmul.f32 %v875, %v871
        %v878 = vmul.f32 %v876, %v872
        %v879 = vadd.f32 %v877, 1.4214138
        %v880 = vadd.f32 %v878, 1.4214138
        %v881 = vmul.f32 %v879, %v871
        %v882 = vmul.f32 %v880, %v872
        %v883 = vadd.f32 %v881, -0.28449672
        %v884 = vadd.f32 %v882, -0.28449672
        %v885 = vmul.f32 %v883, %v871
        %v886 = vmul.f32 %v884, %v872
        %v887 = vadd.f32 %v885, 0.2548296
        %v888 = vadd.f32 %v886, 0.2548296
        %v889 = vmul.f32 %v887, %v871
        %v890 = vmul.f32 %v888, %v872
        %v891 = vsub.f32 0.0, %v859
        %v892 = vsub.f32 0.0, %v860
        %v893 = vmul.f32 %v891, %v859
        %v894 = vmul.f32 %v892, %v860
        %v895 = vmul.f32 %v893, 1.442695
        %v896 = vpow.pop %v895
        %v897 = vmul.f32 %v894, 1.442695
        %v898 = vpow.pop %v897
        %v899 = vmul.f32 %v889, %v896
        %v900 = vmul.f32 %v890, %v898
        %v901 = vmax.f32 %v855, 0.0
        %v902 = vmax.f32 %v856, 0.0
        %v903 = vmul.f32 %v859, 0.70710677
        %v904 = vmul.f32 %v860, 0.70710677
        %v905 = vmul.f32 %v903, %v899
        %v906 = vmul.f32 %v904, %v900
        %v907 = vsub.f32 %v901, %v905
        %v908 = vsub.f32 %v902, %v906
        %s909 = scalar_select %p800, 1, 0
        %v910 = vstv %s909
        %vm911 = vcmp.eq.s32.totalorder %v910, 1
        %v912 = vsel %vm911, %v907, 0.0
        %v913 = vsel %vm911, %v908, 0.0
        %916 = vrot.lane.b32.xlu0 %v798, 16
        %v917 = vpop.permute.xlu0 %916
        %918 = vrot.lane.b32.xlu0 %v799, 16
        %v919 = vpop.permute.xlu0 %918
        %924 = vrot.lane.b32.xlu0 %v682, 16
        %v925 = vpop.permute.xlu0 %924
        %926 = vrot.lane.b32.xlu0 %v683, 16
        %v927 = vpop.permute.xlu0 %926
        %932 = vrot.lane.b32.xlu0 %v912, 16
        %v933 = vpop.permute.xlu0 %932
        %934 = vrot.lane.b32.xlu0 %v913, 16
        %v935 = vpop.permute.xlu0 %934
        %vm938 = vcmask 130048
        %v939 = vsel %vm938, %v917, %v925
        %v940 = vsel %vm938, %v919, %v927
        %v941 = vsel %vm938, %v925, %v933
        %v942 = vsel %vm938, %v927, %v935
        %v943 = vlaneseq
        %v944 = vand.u32 %v943, 127
        %v945 = vadd.s32 %v944, 128
        %vm946 = vcmp.lt.s32.totalorder %v944, 0
        %v947 = vsub.s32 0, %v944
        %v948 = vsel %vm946, %v947, %v944
        %v949 = vshrl.u32 %v948, 4
        %v950 = vand.u32 %v948, 15
        %v951 = vsub.s32 0, %v950
        %v952 = vsel %vm946, %v951, %v950
        %vm953 = vcmp.lt.s32.totalorder %v945, 0
        %v954 = vsub.s32 0, %v945
        %v955 = vsel %vm953, %v954, %v945
        %v956 = vshrl.u32 %v955, 4
        %v957 = vand.u32 %v955, 15
        %v958 = vsub.s32 0, %v957
        %v959 = vsel %vm953, %v958, %v957
        %vm960 = vcmp.ne.s32.totalorder %v952, 0
        %vm961 = vcmp.ne.s32.totalorder %v959, 0
        %vm962 = vcmp.lt.s32.totalorder %v952, 0
        %vm963 = vcmp.lt.s32.totalorder %v959, 0
        %vm964 = vmand %vm962, %vm960
        %vm965 = vmand %vm963, %vm961
        %v966 = vadd.s32 %v952, 16
        %v967 = vadd.s32 %v959, 16
        %v968 = vsel %vm964, %v966, %v952
        %v969 = vsel %vm965, %v967, %v959
        %vm970 = vcmp.ge.s32.totalorder %v968, 1
        %vm971 = vcmp.ge.s32.totalorder %v969, 1
        %vm972 = vcmp.le.s32.totalorder %v968, 14
        %vm973 = vcmp.le.s32.totalorder %v969, 14
        %v974 = vld [vmem:[%s7] sm:$0xff]
        %v975 = vld [vmem:[%s7 + $0x8] sm:$0xff]
        %980 = vrot.lane.b32.xlu0 %v939, 16
        %v981 = vpop.permute.xlu0 %980
        %982 = vrot.lane.b32.xlu0 %v941, 16
        %v983 = vpop.permute.xlu0 %982
        %984 = vrot.lane.b32.xlu0 %v940, 16
        %v985 = vpop.permute.xlu0 %984
        %986 = vrot.lane.b32.xlu0 %v942, 16
        %v987 = vpop.permute.xlu0 %986
        %v988 = vsel %vm938, %v981, %v983
        %v989 = vsel %vm938, %v985, %v987
        %v994 = vsel %vm938, 0.0, %v981
        %v995 = vsel %vm938, 0.0, %v985
        %997 = vset.pattern.permute.xlu0 1
        %998 = vperm.xlu0 %997, %v974
        %v999 = vpop.permute.xlu0 %998
        %1002 = vset.pattern.permute.xlu0 1
        %1003 = vperm.xlu0 %1002, %v975
        %v1004 = vpop.permute.xlu0 %1003
        %v1006 = vmul.f32 %v994, %v999
        %v1007 = vmul.f32 %v988, %v999
        %v1008 = vmul.f32 %v995, %v1004
        %v1009 = vmul.f32 %v989, %v1004
        %1010 = vset.pattern.permute.xlu0 4
        %1011 = vperm.xlu0 %1010, %v974
        %v1012 = vpop.permute.xlu0 %1011
        %1014 = vset.pattern.permute.xlu0 4
        %1015 = vperm.xlu0 %1014, %v975
        %v1016 = vpop.permute.xlu0 %1015
        %v1018 = vmul.f32 %v939, %v1012
        %v1019 = vmul.f32 %v941, %v1012
        %v1020 = vmul.f32 %v940, %v1016
        %v1021 = vmul.f32 %v942, %v1016
        %v1022 = vadd.f32 %v1006, %v1018
        %v1023 = vadd.f32 %v1007, %v1019
        %v1024 = vadd.f32 %v1008, %v1020
        %v1025 = vadd.f32 %v1009, %v1021
        %1026 = vrot.lane.b32.xlu0 %v939, 112
        %v1027 = vpop.permute.xlu0 %1026
        %1028 = vrot.lane.b32.xlu0 %v941, 112
        %v1029 = vpop.permute.xlu0 %1028
        %1030 = vrot.lane.b32.xlu0 %v940, 112
        %v1031 = vpop.permute.xlu0 %1030
        %1032 = vrot.lane.b32.xlu0 %v942, 112
        %v1033 = vpop.permute.xlu0 %1032
        %vm1034 = vcmask 916480
        %v1035 = vsel %vm1034, %v1027, %v1029
        %v1036 = vsel %vm1034, %v1031, %v1033
        %v1041 = vsel %vm938, %v1029, 0.0
        %v1042 = vsel %vm938, %v1033, 0.0
        %1043 = vset.pattern.permute.xlu0 7
        %1044 = vperm.xlu0 %1043, %v974
        %v1045 = vpop.permute.xlu0 %1044
        %1047 = vset.pattern.permute.xlu0 7
        %1048 = vperm.xlu0 %1047, %v975
        %v1049 = vpop.permute.xlu0 %1048
        %v1051 = vmul.f32 %v1035, %v1045
        %v1052 = vmul.f32 %v1041, %v1045
        %v1053 = vmul.f32 %v1036, %v1049
        %v1054 = vmul.f32 %v1042, %v1049
        %v1055 = vadd.f32 %v1022, %v1051
        %v1056 = vadd.f32 %v1023, %v1052
        %v1057 = vadd.f32 %v1024, %v1053
        %v1058 = vadd.f32 %v1025, %v1054
        %1059 = vrot.lane.b32.xlu0 %v939, 17
        %v1060 = vpop.permute.xlu0 %1059
        %1061 = vrot.lane.b32.xlu0 %v941, 17
        %v1062 = vpop.permute.xlu0 %1061
        %1063 = vrot.lane.b32.xlu0 %v940, 17
        %v1064 = vpop.permute.xlu0 %1063
        %1065 = vrot.lane.b32.xlu0 %v942, 17
        %v1066 = vpop.permute.xlu0 %1065
        %vm1067 = vcmask 138240
        %v1068 = vsel %vm1067, %v1060, %v1062
        %v1069 = vsel %vm1067, %v1064, %v1066
        %v1074 = vsel %vm1067, 0.0, %v1060
        %v1075 = vsel %vm1067, 0.0, %v1064
        %1076 = vset.pattern.permute.xlu0 0
        %1077 = vperm.xlu0 %1076, %v974
        %v1078 = vpop.permute.xlu0 %1077
        %1080 = vset.pattern.permute.xlu0 0
        %1081 = vperm.xlu0 %1080, %v975
        %v1082 = vpop.permute.xlu0 %1081
        %v1084 = vmul.f32 %v1074, %v1078
        %v1085 = vmul.f32 %v1068, %v1078
        %v1086 = vmul.f32 %v1075, %v1082
        %v1087 = vmul.f32 %v1069, %v1082
        %1088 = vrot.lane.b32.xlu0 %v939, 1
        %v1089 = vpop.permute.xlu0 %1088
        %1090 = vrot.lane.b32.xlu0 %v941, 1
        %v1091 = vpop.permute.xlu0 %1090
        %1092 = vrot.lane.b32.xlu0 %v940, 1
        %v1093 = vpop.permute.xlu0 %1092
        %1094 = vrot.lane.b32.xlu0 %v942, 1
        %v1095 = vpop.permute.xlu0 %1094
        %vm1096 = vcmask 7168
        %v1097 = vsel %vm1096, %v1089, %v1091
        %v1098 = vsel %vm1096, %v1093, %v1095
        %v1103 = vsel %vm1096, 0.0, %v1089
        %v1104 = vsel %vm1096, 0.0, %v1093
        %1105 = vset.pattern.permute.xlu0 3
        %1106 = vperm.xlu0 %1105, %v974
        %v1107 = vpop.permute.xlu0 %1106
        %1109 = vset.pattern.permute.xlu0 3
        %1110 = vperm.xlu0 %1109, %v975
        %v1111 = vpop.permute.xlu0 %1110
        %v1113 = vmul.f32 %v1103, %v1107
        %v1114 = vmul.f32 %v1097, %v1107
        %v1115 = vmul.f32 %v1104, %v1111
        %v1116 = vmul.f32 %v1098, %v1111
        %v1117 = vadd.f32 %v1084, %v1113
        %v1118 = vadd.f32 %v1085, %v1114
        %v1119 = vadd.f32 %v1086, %v1115
        %v1120 = vadd.f32 %v1087, %v1116
        %1121 = vrot.lane.b32.xlu0 %v939, 113
        %v1122 = vpop.permute.xlu0 %1121
        %1123 = vrot.lane.b32.xlu0 %v941, 113
        %v1124 = vpop.permute.xlu0 %1123
        %1125 = vrot.lane.b32.xlu0 %v940, 113
        %v1126 = vpop.permute.xlu0 %1125
        %1127 = vrot.lane.b32.xlu0 %v942, 113
        %v1128 = vpop.permute.xlu0 %1127
        %vm1129 = vcmask 924672
        %v1130 = vsel %vm1129, %v1122, %v1124
        %v1131 = vsel %vm1129, %v1126, %v1128
        %v1136 = vsel %vm1067, %v1124, 0.0
        %v1137 = vsel %vm1067, %v1128, 0.0
        %1138 = vset.pattern.permute.xlu0 6
        %1139 = vperm.xlu0 %1138, %v974
        %v1140 = vpop.permute.xlu0 %1139
        %1142 = vset.pattern.permute.xlu0 6
        %1143 = vperm.xlu0 %1142, %v975
        %v1144 = vpop.permute.xlu0 %1143
        %v1146 = vmul.f32 %v1130, %v1140
        %v1147 = vmul.f32 %v1136, %v1140
        %v1148 = vmul.f32 %v1131, %v1144
        %v1149 = vmul.f32 %v1137, %v1144
        %v1150 = vadd.f32 %v1117, %v1146
        %v1151 = vadd.f32 %v1118, %v1147
        %v1152 = vadd.f32 %v1119, %v1148
        %v1153 = vadd.f32 %v1120, %v1149
        %1154 = vrot.lane.b32.xlu0 %v939, 15
        %v1155 = vpop.permute.xlu0 %1154
        %1156 = vrot.lane.b32.xlu0 %v941, 15
        %v1157 = vpop.permute.xlu0 %1156
        %1158 = vrot.lane.b32.xlu0 %v940, 15
        %v1159 = vpop.permute.xlu0 %1158
        %1160 = vrot.lane.b32.xlu0 %v942, 15
        %v1161 = vpop.permute.xlu0 %1160
        %vm1162 = vcmask 121856
        %v1163 = vsel %vm1162, %v1155, %v1157
        %v1164 = vsel %vm1162, %v1159, %v1161
        %v1169 = vsel %vm1162, 0.0, %v1155
        %v1170 = vsel %vm1162, 0.0, %v1159
        %1171 = vset.pattern.permute.xlu0 2
        %1172 = vperm.xlu0 %1171, %v974
        %v1173 = vpop.permute.xlu0 %1172
        %1175 = vset.pattern.permute.xlu0 2
        %1176 = vperm.xlu0 %1175, %v975
        %v1177 = vpop.permute.xlu0 %1176
        %v1179 = vmul.f32 %v1169, %v1173
        %v1180 = vmul.f32 %v1163, %v1173
        %v1181 = vmul.f32 %v1170, %v1177
        %v1182 = vmul.f32 %v1164, %v1177
        %1183 = vrot.lane.b32.xlu0 %v939, 127
        %v1184 = vpop.permute.xlu0 %1183
        %1185 = vrot.lane.b32.xlu0 %v941, 127
        %v1186 = vpop.permute.xlu0 %1185
        %1187 = vrot.lane.b32.xlu0 %v940, 127
        %v1188 = vpop.permute.xlu0 %1187
        %1189 = vrot.lane.b32.xlu0 %v942, 127
        %v1190 = vpop.permute.xlu0 %1189
        %vm1191 = vcmask 1039360
        %v1192 = vsel %vm1191, %v1184, %v1186
        %v1193 = vsel %vm1191, %v1188, %v1190
        %vm1198 = vcmask 252928
        %v1199 = vsel %vm1198, %v1186, 0.0
        %v1200 = vsel %vm1198, %v1190, 0.0
        %1201 = vset.pattern.permute.xlu0 5
        %1202 = vperm.xlu0 %1201, %v974
        %v1203 = vpop.permute.xlu0 %1202
        %1205 = vset.pattern.permute.xlu0 5
        %1206 = vperm.xlu0 %1205, %v975
        %v1207 = vpop.permute.xlu0 %1206
        %v1209 = vmul.f32 %v1192, %v1203
        %v1210 = vmul.f32 %v1199, %v1203
        %v1211 = vmul.f32 %v1193, %v1207
        %v1212 = vmul.f32 %v1200, %v1207
        %v1213 = vadd.f32 %v1179, %v1209
        %v1214 = vadd.f32 %v1180, %v1210
        %v1215 = vadd.f32 %v1181, %v1211
        %v1216 = vadd.f32 %v1182, %v1212
        %1217 = vrot.lane.b32.xlu0 %v939, 111
        %v1218 = vpop.permute.xlu0 %1217
        %1219 = vrot.lane.b32.xlu0 %v941, 111
        %v1220 = vpop.permute.xlu0 %1219
        %1221 = vrot.lane.b32.xlu0 %v940, 111
        %v1222 = vpop.permute.xlu0 %1221
        %1223 = vrot.lane.b32.xlu0 %v942, 111
        %v1224 = vpop.permute.xlu0 %1223
        %vm1225 = vcmask 908288
        %v1226 = vsel %vm1225, %v1218, %v1220
        %v1227 = vsel %vm1225, %v1222, %v1224
        %v1232 = vsel %vm1162, %v1220, 0.0
        %v1233 = vsel %vm1162, %v1224, 0.0
        %1234 = vset.pattern.permute.xlu0 8
        %1235 = vperm.xlu0 %1234, %v974
        %v1236 = vpop.permute.xlu0 %1235
        %1238 = vset.pattern.permute.xlu0 8
        %1239 = vperm.xlu0 %1238, %v975
        %v1240 = vpop.permute.xlu0 %1239
        %v1242 = vmul.f32 %v1226, %v1236
        %v1243 = vmul.f32 %v1232, %v1236
        %v1244 = vmul.f32 %v1227, %v1240
        %v1245 = vmul.f32 %v1233, %v1240
        %v1246 = vadd.f32 %v1213, %v1242
        %v1247 = vadd.f32 %v1214, %v1243
        %v1248 = vadd.f32 %v1215, %v1244
        %v1249 = vadd.f32 %v1216, %v1245
        %v1250 = vsel %vm970, 1, 0
        %v1251 = vsel %vm971, 1, 0
        %vm1252 = vcmp.eq.s32.totalorder %v1250, 1
        %vm1253 = vcmp.eq.s32.totalorder %v1251, 1
        %v1254 = vsel %vm1252, %v1150, 0.0
        %v1255 = vsel %vm1253, %v1151, 0.0
        %v1256 = vsel %vm1252, %v1152, 0.0
        %v1257 = vsel %vm1253, %v1153, 0.0
        %v1258 = vadd.f32 %v1055, %v1254
        %v1259 = vadd.f32 %v1056, %v1255
        %v1260 = vadd.f32 %v1057, %v1256
        %v1261 = vadd.f32 %v1058, %v1257
        %v1262 = vsel %vm972, 1, 0
        %v1263 = vsel %vm973, 1, 0
        %vm1264 = vcmp.eq.s32.totalorder %v1262, 1
        %vm1265 = vcmp.eq.s32.totalorder %v1263, 1
        %v1266 = vsel %vm1264, %v1246, 0.0
        %v1267 = vsel %vm1265, %v1247, 0.0
        %v1268 = vsel %vm1264, %v1248, 0.0
        %v1269 = vsel %vm1265, %v1249, 0.0
        %v1270 = vadd.f32 %v1258, %v1266
        %v1271 = vadd.f32 %v1259, %v1267
        %v1272 = vadd.f32 %v1260, %v1268
        %v1273 = vadd.f32 %v1261, %v1269
        %v1274 = vld [vmem:[%s8] sm:$0xff]
        %v1275 = vld [vmem:[%s8 + $0x8] sm:$0xff]
        %1277 = vset.pattern.permute.xlu0 0
        %1278 = vperm.xlu0 %1277, %v1274
        %v1279 = vpop.permute.xlu0 %1278
        %1282 = vset.pattern.permute.xlu0 0
        %1283 = vperm.xlu0 %1282, %v1275
        %v1284 = vpop.permute.xlu0 %1283
        %v1286 = vadd.f32 %v1270, %v1279
        %v1287 = vadd.f32 %v1271, %v1279
        %v1288 = vadd.f32 %v1272, %v1284
        %v1289 = vadd.f32 %v1273, %v1284
        %v1290 = vmul.f32 %v1286, 0.70710677
        %v1291 = vmul.f32 %v1287, 0.70710677
        %v1292 = vmul.f32 %v1288, 0.70710677
        %v1293 = vmul.f32 %v1289, 0.70710677
        %v1294 = vand.u32 2147483647, %v1290
        %v1295 = vand.u32 2147483647, %v1291
        %v1296 = vand.u32 2147483647, %v1292
        %v1297 = vand.u32 2147483647, %v1293
        %v1298 = vmul.f32 %v1294, 0.3275911
        %v1299 = vmul.f32 %v1295, 0.3275911
        %v1300 = vmul.f32 %v1296, 0.3275911
        %v1301 = vmul.f32 %v1297, 0.3275911
        %v1302 = vadd.f32 %v1298, 1.0
        %v1303 = vadd.f32 %v1299, 1.0
        %v1304 = vadd.f32 %v1300, 1.0
        %v1305 = vadd.f32 %v1301, 1.0
        %v1306 = vrcp.pop %v1302
        %v1307 = vrcp.pop %v1303
        %v1308 = vrcp.pop %v1304
        %v1309 = vrcp.pop %v1305
        %v1310 = vmul.f32 %v1302, %v1306
        %v1311 = vmul.f32 %v1303, %v1307
        %v1312 = vmul.f32 %v1304, %v1308
        %v1313 = vmul.f32 %v1305, %v1309
        %v1314 = vsub.f32 2.0, %v1310
        %v1315 = vsub.f32 2.0, %v1311
        %v1316 = vsub.f32 2.0, %v1312
        %v1317 = vsub.f32 2.0, %v1313
        %v1318 = vmul.f32 %v1306, %v1314
        %v1319 = vmul.f32 %v1307, %v1315
        %v1320 = vmul.f32 %v1308, %v1316
        %v1321 = vmul.f32 %v1309, %v1317
        %v1322 = vmul.f32 %v1318, 1.0614054
        %v1323 = vmul.f32 %v1319, 1.0614054
        %v1324 = vmul.f32 %v1320, 1.0614054
        %v1325 = vmul.f32 %v1321, 1.0614054
        %v1326 = vadd.f32 %v1322, -1.4531521
        %v1327 = vadd.f32 %v1323, -1.4531521
        %v1328 = vadd.f32 %v1324, -1.4531521
        %v1329 = vadd.f32 %v1325, -1.4531521
        %v1330 = vmul.f32 %v1326, %v1318
        %v1331 = vmul.f32 %v1327, %v1319
        %v1332 = vmul.f32 %v1328, %v1320
        %v1333 = vmul.f32 %v1329, %v1321
        %v1334 = vadd.f32 %v1330, 1.4214138
        %v1335 = vadd.f32 %v1331, 1.4214138
        %v1336 = vadd.f32 %v1332, 1.4214138
        %v1337 = vadd.f32 %v1333, 1.4214138
        %v1338 = vmul.f32 %v1334, %v1318
        %v1339 = vmul.f32 %v1335, %v1319
        %v1340 = vmul.f32 %v1336, %v1320
        %v1341 = vmul.f32 %v1337, %v1321
        %v1342 = vadd.f32 %v1338, -0.28449672
        %v1343 = vadd.f32 %v1339, -0.28449672
        %v1344 = vadd.f32 %v1340, -0.28449672
        %v1345 = vadd.f32 %v1341, -0.28449672
        %v1346 = vmul.f32 %v1342, %v1318
        %v1347 = vmul.f32 %v1343, %v1319
        %v1348 = vmul.f32 %v1344, %v1320
        %v1349 = vmul.f32 %v1345, %v1321
        %v1350 = vadd.f32 %v1346, 0.2548296
        %v1351 = vadd.f32 %v1347, 0.2548296
        %v1352 = vadd.f32 %v1348, 0.2548296
        %v1353 = vadd.f32 %v1349, 0.2548296
        %v1354 = vmul.f32 %v1350, %v1318
        %v1355 = vmul.f32 %v1351, %v1319
        %v1356 = vmul.f32 %v1352, %v1320
        %v1357 = vmul.f32 %v1353, %v1321
        %v1358 = vsub.f32 0.0, %v1294
        %v1359 = vsub.f32 0.0, %v1295
        %v1360 = vsub.f32 0.0, %v1296
        %v1361 = vsub.f32 0.0, %v1297
        %v1362 = vmul.f32 %v1358, %v1294
        %v1363 = vmul.f32 %v1359, %v1295
        %v1364 = vmul.f32 %v1360, %v1296
        %v1365 = vmul.f32 %v1361, %v1297
        %v1366 = vmul.f32 %v1362, 1.442695
        %v1367 = vpow.pop %v1366
        %v1368 = vmul.f32 %v1363, 1.442695
        %v1369 = vpow.pop %v1368
        %v1370 = vmul.f32 %v1364, 1.442695
        %v1371 = vpow.pop %v1370
        %v1372 = vmul.f32 %v1365, 1.442695
        %v1373 = vpow.pop %v1372
        %v1374 = vmul.f32 %v1354, %v1367
        %v1375 = vmul.f32 %v1355, %v1369
        %v1376 = vmul.f32 %v1356, %v1371
        %v1377 = vmul.f32 %v1357, %v1373
        %v1378 = vmax.f32 %v1286, 0.0
        %v1379 = vmax.f32 %v1287, 0.0
        %v1380 = vmax.f32 %v1288, 0.0
        %v1381 = vmax.f32 %v1289, 0.0
        %v1382 = vmul.f32 %v1294, 0.70710677
        %v1383 = vmul.f32 %v1295, 0.70710677
        %v1384 = vmul.f32 %v1296, 0.70710677
        %v1385 = vmul.f32 %v1297, 0.70710677
        %v1386 = vmul.f32 %v1382, %v1374
        %v1387 = vmul.f32 %v1383, %v1375
        %v1388 = vmul.f32 %v1384, %v1376
        %v1389 = vmul.f32 %v1385, %v1377
        %v1390 = vsub.f32 %v1378, %v1386
        %v1391 = vsub.f32 %v1379, %v1387
        %v1392 = vsub.f32 %v1380, %v1388
        %v1393 = vsub.f32 %v1381, %v1389
        %1398 = vrot.lane.b32.xlu0 %v1390, 112
        %v1399 = vpop.permute.xlu0 %1398
        %1400 = vrot.lane.b32.xlu0 %v1391, 112
        %v1401 = vpop.permute.xlu0 %1400
        %1402 = vrot.lane.b32.xlu0 %v1392, 112
        %v1403 = vpop.permute.xlu0 %1402
        %1404 = vrot.lane.b32.xlu0 %v1393, 112
        %v1405 = vpop.permute.xlu0 %1404
        %v1406 = vsel %vm1034, %v1399, %v1401
        %v1407 = vsel %vm1034, %v1403, %v1405
        %v1410 = vadd.f32 %v682, %v1406
        %v1411 = vadd.f32 %v683, %v1407
        %v1412 = vld [vmem:[%s9] sm:$0xf]
        %1414 = vset.pattern.permute.xlu0 0
        %1415 = vperm.xlu0 %1414, %v1412
        %v1416 = vpop.permute.xlu0 %1415
        %v1418 = vlaneseq
        %v1419 = vshrl.u32 %v1418, 7
        %v1420 = vsub.s32 0, %v1419
        %v1421 = vrot.slane %v1410, %v1420
        %v1422 = vmul.f32 %v1416, %v1421
        %1423 = vset.pattern.permute.xlu0 1
        %1424 = vperm.xlu0 %1423, %v1412
        %v1425 = vpop.permute.xlu0 %1424
        %v1427 = vlaneseq
        %v1428 = vshrl.u32 %v1427, 7
        %v1429 = vsub.s32 1, %v1428
        %v1430 = vrot.slane %v1410, %v1429
        %v1431 = vmul.f32 %v1425, %v1430
        %v1432 = vadd.f32 %v1422, %v1431
        %1433 = vset.pattern.permute.xlu0 2
        %1434 = vperm.xlu0 %1433, %v1412
        %v1435 = vpop.permute.xlu0 %1434
        %v1437 = vlaneseq
        %v1438 = vshrl.u32 %v1437, 7
        %v1439 = vsub.s32 2, %v1438
        %v1440 = vrot.slane %v1410, %v1439
        %v1441 = vmul.f32 %v1435, %v1440
        %v1442 = vadd.f32 %v1432, %v1441
        %1443 = vset.pattern.permute.xlu0 3
        %1444 = vperm.xlu0 %1443, %v1412
        %v1445 = vpop.permute.xlu0 %1444
        %v1447 = vlaneseq
        %v1448 = vshrl.u32 %v1447, 7
        %v1449 = vsub.s32 3, %v1448
        %v1450 = vrot.slane %v1410, %v1449
        %v1451 = vmul.f32 %v1445, %v1450
        %v1452 = vadd.f32 %v1442, %v1451
        %1453 = vset.pattern.permute.xlu0 4
        %1454 = vperm.xlu0 %1453, %v1412
        %v1455 = vpop.permute.xlu0 %1454
        %v1457 = vlaneseq
        %v1458 = vshrl.u32 %v1457, 7
        %v1459 = vsub.s32 4, %v1458
        %v1460 = vrot.slane %v1410, %v1459
        %v1461 = vmul.f32 %v1455, %v1460
        %v1462 = vadd.f32 %v1452, %v1461
        %1463 = vset.pattern.permute.xlu0 5
        %1464 = vperm.xlu0 %1463, %v1412
        %v1465 = vpop.permute.xlu0 %1464
        %v1467 = vlaneseq
        %v1468 = vshrl.u32 %v1467, 7
        %v1469 = vsub.s32 5, %v1468
        %v1470 = vrot.slane %v1410, %v1469
        %v1471 = vmul.f32 %v1465, %v1470
        %v1472 = vadd.f32 %v1462, %v1471
        %1473 = vset.pattern.permute.xlu0 6
        %1474 = vperm.xlu0 %1473, %v1412
        %v1475 = vpop.permute.xlu0 %1474
        %v1477 = vlaneseq
        %v1478 = vshrl.u32 %v1477, 7
        %v1479 = vsub.s32 6, %v1478
        %v1480 = vrot.slane %v1410, %v1479
        %v1481 = vmul.f32 %v1475, %v1480
        %v1482 = vadd.f32 %v1472, %v1481
        %1483 = vset.pattern.permute.xlu0 7
        %1484 = vperm.xlu0 %1483, %v1412
        %v1485 = vpop.permute.xlu0 %1484
        %v1487 = vlaneseq
        %v1488 = vshrl.u32 %v1487, 7
        %v1489 = vsub.s32 7, %v1488
        %v1490 = vrot.slane %v1410, %v1489
        %v1491 = vmul.f32 %v1485, %v1490
        %v1492 = vadd.f32 %v1482, %v1491
        %1493 = vset.pattern.permute.xlu0 8
        %1494 = vperm.xlu0 %1493, %v1412
        %v1495 = vpop.permute.xlu0 %1494
        %v1497 = vlaneseq
        %v1498 = vshrl.u32 %v1497, 7
        %v1499 = vsub.s32 0, %v1498
        %v1500 = vrot.slane %v1411, %v1499
        %v1501 = vmul.f32 %v1495, %v1500
        %v1502 = vadd.f32 %v1492, %v1501
        %1503 = vset.pattern.permute.xlu0 9
        %1504 = vperm.xlu0 %1503, %v1412
        %v1505 = vpop.permute.xlu0 %1504
        %v1507 = vlaneseq
        %v1508 = vshrl.u32 %v1507, 7
        %v1509 = vsub.s32 1, %v1508
        %v1510 = vrot.slane %v1411, %v1509
        %v1511 = vmul.f32 %v1505, %v1510
        %v1512 = vadd.f32 %v1502, %v1511
        %1513 = vset.pattern.permute.xlu0 10
        %1514 = vperm.xlu0 %1513, %v1412
        %v1515 = vpop.permute.xlu0 %1514
        %v1517 = vlaneseq
        %v1518 = vshrl.u32 %v1517, 7
        %v1519 = vsub.s32 2, %v1518
        %v1520 = vrot.slane %v1411, %v1519
        %v1521 = vmul.f32 %v1515, %v1520
        %v1522 = vadd.f32 %v1512, %v1521
        %1523 = vset.pattern.permute.xlu0 11
        %1524 = vperm.xlu0 %1523, %v1412
        %v1525 = vpop.permute.xlu0 %1524
        %v1527 = vlaneseq
        %v1528 = vshrl.u32 %v1527, 7
        %v1529 = vsub.s32 3, %v1528
        %v1530 = vrot.slane %v1411, %v1529
        %v1531 = vmul.f32 %v1525, %v1530
        %v1532 = vadd.f32 %v1522, %v1531
        %1533 = vset.pattern.permute.xlu0 12
        %1534 = vperm.xlu0 %1533, %v1412
        %v1535 = vpop.permute.xlu0 %1534
        %v1537 = vlaneseq
        %v1538 = vshrl.u32 %v1537, 7
        %v1539 = vsub.s32 4, %v1538
        %v1540 = vrot.slane %v1411, %v1539
        %v1541 = vmul.f32 %v1535, %v1540
        %v1542 = vadd.f32 %v1532, %v1541
        %1543 = vset.pattern.permute.xlu0 13
        %1544 = vperm.xlu0 %1543, %v1412
        %v1545 = vpop.permute.xlu0 %1544
        %v1547 = vlaneseq
        %v1548 = vshrl.u32 %v1547, 7
        %v1549 = vsub.s32 5, %v1548
        %v1550 = vrot.slane %v1411, %v1549
        %v1551 = vmul.f32 %v1545, %v1550
        %v1552 = vadd.f32 %v1542, %v1551
        %1553 = vset.pattern.permute.xlu0 14
        %1554 = vperm.xlu0 %1553, %v1412
        %v1555 = vpop.permute.xlu0 %1554
        %v1557 = vlaneseq
        %v1558 = vshrl.u32 %v1557, 7
        %v1559 = vsub.s32 6, %v1558
        %v1560 = vrot.slane %v1411, %v1559
        %v1561 = vmul.f32 %v1555, %v1560
        %v1562 = vadd.f32 %v1552, %v1561
        %1563 = vset.pattern.permute.xlu0 15
        %1564 = vperm.xlu0 %1563, %v1412
        %v1565 = vpop.permute.xlu0 %1564
        %v1567 = vlaneseq
        %v1568 = vshrl.u32 %v1567, 7
        %v1569 = vsub.s32 7, %v1568
        %v1570 = vrot.slane %v1411, %v1569
        %v1571 = vmul.f32 %v1565, %v1570
        %v1572 = vadd.f32 %v1562, %v1571
        %v1573 = vld [vmem:[%s10] sm:$0xf]
        %1575 = vset.pattern.permute.xlu0 0
        %1576 = vperm.xlu0 %1575, %v1573
        %v1577 = vpop.permute.xlu0 %1576
        %v1579 = vadd.f32 %v1572, %v1577
        %1580 = vst [vmem:[%s477] sm:$0xf] %v1579
        %s1581 = sand.u32 %s311, 1
        %s1582 = scalar_lea.sflag [#allocation3], %s1581
        %s1583 = sand.u32 %s311, 1
        %s1584 = smul.addr %s1583, 4
        %s1585 = scalar_lea.vmem [#allocation2], %s1584
        // Predicated region
        $region65: #{tpu_custom_call.1} parent=63 // pred_check
          %p1586 = pneg %p321
        $region66: #{tpu_custom_call.1} parent=63 // pred_check_branch
          %1588 = sbr.rel (%p1586) target = $region68
        $region67: #{tpu_custom_call.1} parent=63 // pred_region
          %s1590 = ssub.s32 64, 64
          %1591 = vsyncadd %s1582, %s1590
          %s1592 = smul.addr %s29, 2
          %s1593 = sadd.s32 %s30, %s1592
          %s1594 = smul.addr %s1593, 64
          %s1595 = scalar_lea.hbm %s11, %s1594
          %s1597 = sshll.u32 %s1585, 4
          %s1598 = int_to_ptr.vmem [resolvable:$true] %s1597
          %1600 = dma.vmem_to_hbm [thread:$0]  %s1598, 64, %s1595, %s1582
        $region68: #{tpu_custom_call.1} parent=63 // pred_fallthru
          _
      $region64: #{tpu_custom_call.1} parent=5 // pred_fallthru
        _
      %p1601 = scmp.le.s32.totalorder 2, %s20
      // Predicated region
      $region69: #{tpu_custom_call.1} parent=5 // pred_check
        %p1602 = pneg %p1601
      $region70: #{tpu_custom_call.1} parent=5 // pred_check_branch
        %1604 = sbr.rel (%p1602) target = $region72
      $region71: #{tpu_custom_call.1} parent=5 // pred_region
        %s1605 = ssub.s32 %s20, 2
        // Predicated region
        $region73: #{tpu_custom_call.1} parent=71 // pred_check
          %p1606 = pneg %p327
        $region74: #{tpu_custom_call.1} parent=71 // pred_check_branch
          %1608 = sbr.rel (%p1606) target = $region76
        $region75: #{tpu_custom_call.1} parent=71 // pred_region
          %s1609 = sand.u32 %s312, 1
          %s1610 = scalar_lea.sflag [#allocation3], %s1609
          %s1611 = sand.u32 %s312, 1
          %s1612 = smul.addr %s1611, 4
          %s1613 = scalar_lea.vmem [#allocation2], %s1612
          %1614 = dma.done %s1610, 64
        $region76: #{tpu_custom_call.1} parent=71 // pred_fallthru
          _
      $region72: #{tpu_custom_call.1} parent=5 // pred_fallthru
        _
    $region6: #{tpu_custom_call.1} parent=1 // loop_footer
      %s24 = sadd.s32 1, %s20
    $region7: #{tpu_custom_call.1} parent=1 // loop_footer_branch
      %19 = sbr.rel target = $region3
    $region8: #{tpu_custom_call.1} parent=1 // loop_exit
      _
    %1615 = vsyncpa [#allocation3], 1
    %s1616 = scalar_lea.sflag [#allocation3], 1
    %1617 = vsyncpa %s1616, 1

</llo_original>
